<compile_context>
chip_gen: v5e
topology: v5e:2x2
jax: 0.10.0
libtpu: 0.0.40
codegen_flags: <defaults>
</compile_context>

<pallas_src>
import jax
import jax.numpy as jnp
from jax import lax
from jax.experimental import pallas as pl
from jax.experimental.pallas import tpu as pltpu


def _subpixel_weight_matrix(weight_oihw, fold_skip=True):
    """(9*Cin, 4*Cout) matmul weights for conv3x3-after-nearest-x2.

    Rows are (padded 3x3 tap k = ky*3+kx, Cin); columns are (phase p = 2a+b, Cout).
    Phase (a, b) produces output pixel (2i+a, 2j+b); its 2x2 effective taps sit at
    padded-input offsets (a+r, b+s), r,s in {0,1}, with weights that are partial
    sums of the original 3x3 kernel.  If fold_skip, an identity is added on the
    centre tap so the skip connection (out += up == x) rides the same matmul.
    """
    Cout, Cin = weight_oihw.shape[0], weight_oihw.shape[1]
    w = jnp.transpose(weight_oihw, (2, 3, 1, 0)).astype(jnp.float32)   # (ky,kx,Cin,Cout)
    # Which original-kernel rows/cols collapse onto each effective 2x2 tap.
    sel = {(0, 0): (0,), (0, 1): (1, 2), (1, 0): (0, 1), (1, 1): (2,)}
    eye = jnp.eye(Cin, Cout, dtype=jnp.float32)
    wb = jnp.zeros((3, 3, Cin, 4, Cout), jnp.float32)
    for a in range(2):
        for b in range(2):
            p = 2 * a + b
            for r in range(2):
                for s in range(2):
                    eff = jnp.zeros((Cin, Cout), jnp.float32)
                    for ky in sel[(a, r)]:
                        for kx in sel[(b, s)]:
                            eff = eff + w[ky, kx]
                    if fold_skip and (a + r, b + s) == (1, 1):
                        eff = eff + eye          # skip: up == x at the centre tap
                    wb = wb.at[a + r, b + s, :, p, :].set(eff)
    return wb.reshape(9 * Cin, 4 * Cout)


def _skip_upconv_kernel(x_ref, w_ref, b_ref, o_ref):
    # x_ref: (1, H+2, W+2, Cin)   zero-padded ORIGINAL-resolution input, NHWC
    #                             (index map constant over the row-tile axis ->
    #                             DMA'd once per batch element, stays resident).
    # w_ref: (9*Cin, 4*Cout)      sub-pixel weights (skip identity folded in).
    # b_ref: (1, 4*Cout)          bias replicated over the 4 phases.
    # o_ref: (1, th, 4*W*Cout)    lane-dense output strip; lane index is
    #                             a*(2*W*Cout) + (2j+b)*Cout + co.
    th = o_ref.shape[1]
    Cin = x_ref.shape[3]
    W = x_ref.shape[2] - 2
    Cout = w_ref.shape[1] // 4
    assert o_ref.shape[2] == 4 * W * Cout

    # Rows of the padded original input needed by this strip: [t*th, t*th+th+2).
    row0 = pl.multiple_of(pl.program_id(1) * th, th)
    xin = x_ref[0, pl.ds(row0, th + 2), :, :]                     # (th+2, W+2, Cin)

    # im2col over the padded ORIGINAL input — one buffer feeding one matmul
    # (the 9 taps are static slices of the already-loaded strip).
    taps = []
    for ky in range(3):
        for kx in range(3):
            taps.append(xin[ky:ky + th, kx:kx + W, :].reshape(th * W, Cin))
    patches = jnp.concatenate(taps, axis=-1)                      # (th*W, 9*Cin)

    # All 4 sub-pixel phases + skip in one MXU push, f32 accumulation;
    # bias + ReLU fused on the result.
    acc = jnp.dot(patches, w_ref[...], preferred_element_type=jnp.float32)
    acc = jnp.maximum(acc + b_ref[...], 0.0)                      # (th*W, 4*Cout)

    # De-interleave the phases into lane-dense NHWC rows.  Columns
    # [2a*Cout, (2a+2)*Cout) of `acc` hold row-phase a ordered as (b, co), so
    # flattening (j, b, co) onto the lane axis yields exactly NHWC row
    # 2*(t*th+i)+a.  Done with static slices + a lane concat (a single
    # (th*W, 2C)->(th, 2WC) reshape would also work on newer Mosaic).
    tmp = acc.reshape(th, W, 4 * Cout)                            # minor dim unchanged
    half_c = 2 * Cout
    half_l = 2 * W * Cout

    def lane_flatten(v):                                          # (th, W, K) -> (th, W*K)
        return jnp.concatenate([v[:, j, :] for j in range(W)], axis=-1)

    o_ref[0, :, 0:half_l] = lane_flatten(tmp[:, :, :half_c]).astype(o_ref.dtype)
    o_ref[0, :, half_l:2 * half_l] = lane_flatten(tmp[:, :, half_c:]).astype(o_ref.dtype)


def _pick_tile_h(H, target=8):
    # Rows of ORIGINAL resolution per grid step (output strip = 2*tile_h rows).
    # Production sizing: pick the largest multiple of 8 whose double-buffered
    # strips fit the scoped VMEM budget; roughly halve the v5e/v6e choice on
    # v7x (64 MiB VMEM per core) or raise vmem_limit_bytes explicitly.
    return target if H % target == 0 else H


@jax.jit
def skip_upconv_nhwc(x_nhwc, weight_oihw, bias):
    """NHWC-native SkipUpConv: relu(up + conv3x3(up)), up = nearest-neighbour x2."""
    N, H, W, C = x_nhwc.shape
    Cout, Cin, kh, kw = weight_oihw.shape
    assert (kh, kw) == (3, 3)
    assert Cin == C and Cout == C, "skip add requires in_channels == out_channels"
    th = _pick_tile_h(H)

    # Cheap glue on the ORIGINAL-resolution tensor only (no 4x intermediate).
    xpad = jnp.pad(x_nhwc, ((0, 0), (1, 1), (1, 1), (0, 0)))      # (N, H+2, W+2, C)
    wbig = _subpixel_weight_matrix(weight_oihw)                    # (9*C, 4*C)
    b4 = jnp.tile(bias.astype(jnp.float32), 4)[None, :]            # (1, 4*C)

    out_flat = pl.pallas_call(
        _skip_upconv_kernel,
        out_shape=jax.ShapeDtypeStruct((N, H, 4 * W * C), x_nhwc.dtype),
        grid_spec=pltpu.PrefetchScalarGridSpec(
            num_scalar_prefetch=0,
            grid=(N, H // th),
            in_specs=[
                # Whole padded image per batch element; constant index over the
                # row-tile axis -> fetched once per n, kept resident in VMEM.
                pl.BlockSpec((1, H + 2, W + 2, C), lambda n, t: (n, 0, 0, 0)),
                # Weights / bias: grid-invariant, fetched once.
                pl.BlockSpec((9 * C, 4 * C), lambda n, t: (0, 0)),
                pl.BlockSpec((1, 4 * C), lambda n, t: (0, 0)),
            ],
            out_specs=pl.BlockSpec((1, th, 4 * W * C), lambda n, t: (n, t, 0)),
        ),
        compiler_params=pltpu.CompilerParams(
            dimension_semantics=("parallel", "parallel")),
    )(xpad, wbig, b4)

    # (N, H, 4*W*C) is bit-identical to NHWC (N, 2H, 2W, C): free reshape.
    return out_flat.reshape(N, 2 * H, 2 * W, C)


@jax.jit
def skip_upconv(x_nchw, weight_oihw, bias):
    """NCHW wrapper matching the PyTorch module (boundary layout glue only)."""
    x_nhwc = jnp.transpose(x_nchw, (0, 2, 3, 1))     # small pre-upsample tensor
    out_nhwc = skip_upconv_nhwc(x_nhwc, weight_oihw, bias)
    # Model-boundary conversion; an NHWC pipeline would consume out_nhwc as-is.
    return jnp.transpose(out_nhwc, (0, 3, 1, 2))


def _reference(x_nchw, weight_oihw, bias):
    """Pure-JAX reference matching the PyTorch module."""
    up = jnp.repeat(jnp.repeat(x_nchw, 2, axis=2), 2, axis=3)
    conv = lax.conv_general_dilated(
        up, weight_oihw, window_strides=(1, 1), padding=((1, 1), (1, 1)),
        dimension_numbers=("NCHW", "OIHW", "NCHW"))
    conv = conv + bias.reshape(1, -1, 1, 1)
    return jnp.maximum(up + conv, 0.0)


if __name__ == "__main__":
    key = jax.random.PRNGKey(0)
    kx, kw, kb = jax.random.split(key, 3)

    N, C, H, W = 2, 8, 16, 16          # in_channels == out_channels == 8
    x = jax.random.normal(kx, (N, C, H, W), dtype=jnp.float32)
    weight = jax.random.normal(kw, (C, C, 3, 3), dtype=jnp.float32) * 0.1
    bias = jax.random.normal(kb, (C,), dtype=jnp.float32) * 0.1

    out = jax.block_until_ready(skip_upconv(x, weight, bias))

    ref = _reference(x, weight, bias)
    assert out.shape == (N, C, 2 * H, 2 * W), out.shape
    assert jnp.allclose(out, ref, atol=1e-4, rtol=1e-4), "mismatch vs reference"

    print("KERNEL_OK")
</pallas_src>

<mosaic_0001>
module attributes {stable_mosaic.version = 11 : i64} {
  func.func @_skip_upconv_kernel(%arg0: i32, %arg1: i32, %arg2: memref<1x18x18x8xf32, #tpu.memory_space<vmem>>, %arg3: memref<72x32xf32, #tpu.memory_space<vmem>>, %arg4: memref<1x32xf32, #tpu.memory_space<vmem>>, %arg5: memref<1x8x512xf32, #tpu.memory_space<vmem>>) attributes {dimension_semantics = [#tpu.dimension_semantics<parallel>, #tpu.dimension_semantics<parallel>], iteration_bounds = array<i64: 2, 2>, scalar_prefetch = 0 : i64, scratch_operands = 0 : i64, tpu.core_type = #tpu.core_type<tc>, window_params = [{transform_indices = @transform_0, window_bounds = array<i64: 1, 18, 18, 8>}, {pipeline_mode = #tpu.pipeline_mode<synchronous>, transform_indices = @transform_1, window_bounds = array<i64: 72, 32>}, {pipeline_mode = #tpu.pipeline_mode<synchronous>, transform_indices = @transform_2, window_bounds = array<i64: 1, 32>}, {transform_indices = @transform_3, window_bounds = array<i64: 1, 8, 512>}]} {
    %c8_i32 = arith.constant 8 : i32
    %0 = arith.muli %arg1, %c8_i32 : i32
    %1 = tpu.assume_multiple %0, 8 : i32
    %c0 = arith.constant 0 : index
    %2 = arith.index_cast %1 : i32 to index
    %c0_0 = arith.constant 0 : index
    %c0_1 = arith.constant 0 : index
    %3 = vector.load %arg2[%c0, %2, %c0_0, %c0_1] : memref<1x18x18x8xf32, #tpu.memory_space<vmem>>, vector<1x10x18x8xf32>
    %4 = vector.shape_cast %3 : vector<1x10x18x8xf32> to vector<10x18x8xf32>
    %5 = vector.extract_strided_slice %4 {offsets = [0, 0, 0], sizes = [8, 16, 8], strides = [1, 1, 1]} : vector<10x18x8xf32> to vector<8x16x8xf32>
    %6 = vector.shape_cast %5 : vector<8x16x8xf32> to vector<128x8xf32>
    %7 = vector.extract_strided_slice %4 {offsets = [0, 1, 0], sizes = [8, 16, 8], strides = [1, 1, 1]} : vector<10x18x8xf32> to vector<8x16x8xf32>
    %8 = vector.shape_cast %7 : vector<8x16x8xf32> to vector<128x8xf32>
    %9 = vector.extract_strided_slice %4 {offsets = [0, 2, 0], sizes = [8, 16, 8], strides = [1, 1, 1]} : vector<10x18x8xf32> to vector<8x16x8xf32>
    %10 = vector.shape_cast %9 : vector<8x16x8xf32> to vector<128x8xf32>
    %11 = vector.extract_strided_slice %4 {offsets = [1, 0, 0], sizes = [8, 16, 8], strides = [1, 1, 1]} : vector<10x18x8xf32> to vector<8x16x8xf32>
    %12 = vector.shape_cast %11 : vector<8x16x8xf32> to vector<128x8xf32>
    %13 = vector.extract_strided_slice %4 {offsets = [1, 1, 0], sizes = [8, 16, 8], strides = [1, 1, 1]} : vector<10x18x8xf32> to vector<8x16x8xf32>
    %14 = vector.shape_cast %13 : vector<8x16x8xf32> to vector<128x8xf32>
    %15 = vector.extract_strided_slice %4 {offsets = [1, 2, 0], sizes = [8, 16, 8], strides = [1, 1, 1]} : vector<10x18x8xf32> to vector<8x16x8xf32>
    %16 = vector.shape_cast %15 : vector<8x16x8xf32> to vector<128x8xf32>
    %17 = vector.extract_strided_slice %4 {offsets = [2, 0, 0], sizes = [8, 16, 8], strides = [1, 1, 1]} : vector<10x18x8xf32> to vector<8x16x8xf32>
    %18 = vector.shape_cast %17 : vector<8x16x8xf32> to vector<128x8xf32>
    %19 = vector.extract_strided_slice %4 {offsets = [2, 1, 0], sizes = [8, 16, 8], strides = [1, 1, 1]} : vector<10x18x8xf32> to vector<8x16x8xf32>
    %20 = vector.shape_cast %19 : vector<8x16x8xf32> to vector<128x8xf32>
    %21 = vector.extract_strided_slice %4 {offsets = [2, 2, 0], sizes = [8, 16, 8], strides = [1, 1, 1]} : vector<10x18x8xf32> to vector<8x16x8xf32>
    %22 = vector.shape_cast %21 : vector<8x16x8xf32> to vector<128x8xf32>
    %23 = tpu.concatenate %6, %8, %10, %12, %14, %16, %18, %20, %22 in 1 : vector<128x8xf32>, vector<128x8xf32>, vector<128x8xf32>, vector<128x8xf32>, vector<128x8xf32>, vector<128x8xf32>, vector<128x8xf32>, vector<128x8xf32>, vector<128x8xf32> -> vector<128x72xf32>
    %c0_2 = arith.constant 0 : index
    %c0_3 = arith.constant 0 : index
    %24 = vector.load %arg3[%c0_2, %c0_3] : memref<72x32xf32, #tpu.memory_space<vmem>>, vector<72x32xf32>
    %cst = arith.constant dense<0.000000e+00> : vector<128x32xf32>
    %25 = tpu.matmul %23, %24, %cst {dimension_numbers = #tpu.dot_dimension_numbers<[1], [0], [0], [1], [0, 0, 1, 1], [], []>} : vector<128x72xf32>, vector<72x32xf32>, vector<128x32xf32> -> vector<128x32xf32>
    %c0_4 = arith.constant 0 : index
    %c0_5 = arith.constant 0 : index
    %26 = vector.load %arg4[%c0_4, %c0_5] : memref<1x32xf32, #tpu.memory_space<vmem>>, vector<1x32xf32>
    %27 = vector.broadcast %26 : vector<1x32xf32> to vector<128x32xf32>
    %28 = arith.addf %25, %27 : vector<128x32xf32>
    %cst_6 = arith.constant 0.000000e+00 : f32
    %29 = vector.broadcast %cst_6 : f32 to vector<128x32xf32>
    %30 = arith.maximumf %28, %29 : vector<128x32xf32>
    %31 = vector.shape_cast %30 : vector<128x32xf32> to vector<8x16x32xf32>
    %32 = vector.extract_strided_slice %31 {offsets = [0, 0, 0], sizes = [8, 16, 16], strides = [1, 1, 1]} : vector<8x16x32xf32> to vector<8x16x16xf32>
    %33 = vector.extract_strided_slice %32 {offsets = [0, 0, 0], sizes = [8, 1, 16], strides = [1, 1, 1]} : vector<8x16x16xf32> to vector<8x1x16xf32>
    %34 = vector.shape_cast %33 : vector<8x1x16xf32> to vector<8x16xf32>
    %35 = vector.extract_strided_slice %32 {offsets = [0, 1, 0], sizes = [8, 1, 16], strides = [1, 1, 1]} : vector<8x16x16xf32> to vector<8x1x16xf32>
    %36 = vector.shape_cast %35 : vector<8x1x16xf32> to vector<8x16xf32>
    %37 = vector.extract_strided_slice %32 {offsets = [0, 2, 0], sizes = [8, 1, 16], strides = [1, 1, 1]} : vector<8x16x16xf32> to vector<8x1x16xf32>
    %38 = vector.shape_cast %37 : vector<8x1x16xf32> to vector<8x16xf32>
    %39 = vector.extract_strided_slice %32 {offsets = [0, 3, 0], sizes = [8, 1, 16], strides = [1, 1, 1]} : vector<8x16x16xf32> to vector<8x1x16xf32>
    %40 = vector.shape_cast %39 : vector<8x1x16xf32> to vector<8x16xf32>
    %41 = vector.extract_strided_slice %32 {offsets = [0, 4, 0], sizes = [8, 1, 16], strides = [1, 1, 1]} : vector<8x16x16xf32> to vector<8x1x16xf32>
    %42 = vector.shape_cast %41 : vector<8x1x16xf32> to vector<8x16xf32>
    %43 = vector.extract_strided_slice %32 {offsets = [0, 5, 0], sizes = [8, 1, 16], strides = [1, 1, 1]} : vector<8x16x16xf32> to vector<8x1x16xf32>
    %44 = vector.shape_cast %43 : vector<8x1x16xf32> to vector<8x16xf32>
    %45 = vector.extract_strided_slice %32 {offsets = [0, 6, 0], sizes = [8, 1, 16], strides = [1, 1, 1]} : vector<8x16x16xf32> to vector<8x1x16xf32>
    %46 = vector.shape_cast %45 : vector<8x1x16xf32> to vector<8x16xf32>
    %47 = vector.extract_strided_slice %32 {offsets = [0, 7, 0], sizes = [8, 1, 16], strides = [1, 1, 1]} : vector<8x16x16xf32> to vector<8x1x16xf32>
    %48 = vector.shape_cast %47 : vector<8x1x16xf32> to vector<8x16xf32>
    %49 = vector.extract_strided_slice %32 {offsets = [0, 8, 0], sizes = [8, 1, 16], strides = [1, 1, 1]} : vector<8x16x16xf32> to vector<8x1x16xf32>
    %50 = vector.shape_cast %49 : vector<8x1x16xf32> to vector<8x16xf32>
    %51 = vector.extract_strided_slice %32 {offsets = [0, 9, 0], sizes = [8, 1, 16], strides = [1, 1, 1]} : vector<8x16x16xf32> to vector<8x1x16xf32>
    %52 = vector.shape_cast %51 : vector<8x1x16xf32> to vector<8x16xf32>
    %53 = vector.extract_strided_slice %32 {offsets = [0, 10, 0], sizes = [8, 1, 16], strides = [1, 1, 1]} : vector<8x16x16xf32> to vector<8x1x16xf32>
    %54 = vector.shape_cast %53 : vector<8x1x16xf32> to vector<8x16xf32>
    %55 = vector.extract_strided_slice %32 {offsets = [0, 11, 0], sizes = [8, 1, 16], strides = [1, 1, 1]} : vector<8x16x16xf32> to vector<8x1x16xf32>
    %56 = vector.shape_cast %55 : vector<8x1x16xf32> to vector<8x16xf32>
    %57 = vector.extract_strided_slice %32 {offsets = [0, 12, 0], sizes = [8, 1, 16], strides = [1, 1, 1]} : vector<8x16x16xf32> to vector<8x1x16xf32>
    %58 = vector.shape_cast %57 : vector<8x1x16xf32> to vector<8x16xf32>
    %59 = vector.extract_strided_slice %32 {offsets = [0, 13, 0], sizes = [8, 1, 16], strides = [1, 1, 1]} : vector<8x16x16xf32> to vector<8x1x16xf32>
    %60 = vector.shape_cast %59 : vector<8x1x16xf32> to vector<8x16xf32>
    %61 = vector.extract_strided_slice %32 {offsets = [0, 14, 0], sizes = [8, 1, 16], strides = [1, 1, 1]} : vector<8x16x16xf32> to vector<8x1x16xf32>
    %62 = vector.shape_cast %61 : vector<8x1x16xf32> to vector<8x16xf32>
    %63 = vector.extract_strided_slice %32 {offsets = [0, 15, 0], sizes = [8, 1, 16], strides = [1, 1, 1]} : vector<8x16x16xf32> to vector<8x1x16xf32>
    %64 = vector.shape_cast %63 : vector<8x1x16xf32> to vector<8x16xf32>
    %65 = tpu.concatenate %34, %36, %38, %40, %42, %44, %46, %48, %50, %52, %54, %56, %58, %60, %62, %64 in 1 : vector<8x16xf32>, vector<8x16xf32>, vector<8x16xf32>, vector<8x16xf32>, vector<8x16xf32>, vector<8x16xf32>, vector<8x16xf32>, vector<8x16xf32>, vector<8x16xf32>, vector<8x16xf32>, vector<8x16xf32>, vector<8x16xf32>, vector<8x16xf32>, vector<8x16xf32>, vector<8x16xf32>, vector<8x16xf32> -> vector<8x256xf32>
    %c0_7 = arith.constant 0 : index
    %c0_8 = arith.constant 0 : index
    %c0_9 = arith.constant 0 : index
    %66 = vector.load %arg5[%c0_7, %c0_8, %c0_9] : memref<1x8x512xf32, #tpu.memory_space<vmem>>, vector<1x8x256xf32>
    %67 = vector.shape_cast %66 : vector<1x8x256xf32> to vector<8x256xf32>
    %68 = vector.shape_cast %65 : vector<8x256xf32> to vector<1x8x256xf32>
    tpu.vector_store %arg5[%c0_7, %c0_8, %c0_9], %68 {strides = array<i32>} : memref<1x8x512xf32, #tpu.memory_space<vmem>>, vector<1x8x256xf32>,
    %69 = vector.extract_strided_slice %31 {offsets = [0, 0, 16], sizes = [8, 16, 16], strides = [1, 1, 1]} : vector<8x16x32xf32> to vector<8x16x16xf32>
    %70 = vector.extract_strided_slice %69 {offsets = [0, 0, 0], sizes = [8, 1, 16], strides = [1, 1, 1]} : vector<8x16x16xf32> to vector<8x1x16xf32>
    %71 = vector.shape_cast %70 : vector<8x1x16xf32> to vector<8x16xf32>
    %72 = vector.extract_strided_slice %69 {offsets = [0, 1, 0], sizes = [8, 1, 16], strides = [1, 1, 1]} : vector<8x16x16xf32> to vector<8x1x16xf32>
    %73 = vector.shape_cast %72 : vector<8x1x16xf32> to vector<8x16xf32>
    %74 = vector.extract_strided_slice %69 {offsets = [0, 2, 0], sizes = [8, 1, 16], strides = [1, 1, 1]} : vector<8x16x16xf32> to vector<8x1x16xf32>
    %75 = vector.shape_cast %74 : vector<8x1x16xf32> to vector<8x16xf32>
    %76 = vector.extract_strided_slice %69 {offsets = [0, 3, 0], sizes = [8, 1, 16], strides = [1, 1, 1]} : vector<8x16x16xf32> to vector<8x1x16xf32>
    %77 = vector.shape_cast %76 : vector<8x1x16xf32> to vector<8x16xf32>
    %78 = vector.extract_strided_slice %69 {offsets = [0, 4, 0], sizes = [8, 1, 16], strides = [1, 1, 1]} : vector<8x16x16xf32> to vector<8x1x16xf32>
    %79 = vector.shape_cast %78 : vector<8x1x16xf32> to vector<8x16xf32>
    %80 = vector.extract_strided_slice %69 {offsets = [0, 5, 0], sizes = [8, 1, 16], strides = [1, 1, 1]} : vector<8x16x16xf32> to vector<8x1x16xf32>
    %81 = vector.shape_cast %80 : vector<8x1x16xf32> to vector<8x16xf32>
    %82 = vector.extract_strided_slice %69 {offsets = [0, 6, 0], sizes = [8, 1, 16], strides = [1, 1, 1]} : vector<8x16x16xf32> to vector<8x1x16xf32>
    %83 = vector.shape_cast %82 : vector<8x1x16xf32> to vector<8x16xf32>
    %84 = vector.extract_strided_slice %69 {offsets = [0, 7, 0], sizes = [8, 1, 16], strides = [1, 1, 1]} : vector<8x16x16xf32> to vector<8x1x16xf32>
    %85 = vector.shape_cast %84 : vector<8x1x16xf32> to vector<8x16xf32>
    %86 = vector.extract_strided_slice %69 {offsets = [0, 8, 0], sizes = [8, 1, 16], strides = [1, 1, 1]} : vector<8x16x16xf32> to vector<8x1x16xf32>
    %87 = vector.shape_cast %86 : vector<8x1x16xf32> to vector<8x16xf32>
    %88 = vector.extract_strided_slice %69 {offsets = [0, 9, 0], sizes = [8, 1, 16], strides = [1, 1, 1]} : vector<8x16x16xf32> to vector<8x1x16xf32>
    %89 = vector.shape_cast %88 : vector<8x1x16xf32> to vector<8x16xf32>
    %90 = vector.extract_strided_slice %69 {offsets = [0, 10, 0], sizes = [8, 1, 16], strides = [1, 1, 1]} : vector<8x16x16xf32> to vector<8x1x16xf32>
    %91 = vector.shape_cast %90 : vector<8x1x16xf32> to vector<8x16xf32>
    %92 = vector.extract_strided_slice %69 {offsets = [0, 11, 0], sizes = [8, 1, 16], strides = [1, 1, 1]} : vector<8x16x16xf32> to vector<8x1x16xf32>
    %93 = vector.shape_cast %92 : vector<8x1x16xf32> to vector<8x16xf32>
    %94 = vector.extract_strided_slice %69 {offsets = [0, 12, 0], sizes = [8, 1, 16], strides = [1, 1, 1]} : vector<8x16x16xf32> to vector<8x1x16xf32>
    %95 = vector.shape_cast %94 : vector<8x1x16xf32> to vector<8x16xf32>
    %96 = vector.extract_strided_slice %69 {offsets = [0, 13, 0], sizes = [8, 1, 16], strides = [1, 1, 1]} : vector<8x16x16xf32> to vector<8x1x16xf32>
    %97 = vector.shape_cast %96 : vector<8x1x16xf32> to vector<8x16xf32>
    %98 = vector.extract_strided_slice %69 {offsets = [0, 14, 0], sizes = [8, 1, 16], strides = [1, 1, 1]} : vector<8x16x16xf32> to vector<8x1x16xf32>
    %99 = vector.shape_cast %98 : vector<8x1x16xf32> to vector<8x16xf32>
    %100 = vector.extract_strided_slice %69 {offsets = [0, 15, 0], sizes = [8, 1, 16], strides = [1, 1, 1]} : vector<8x16x16xf32> to vector<8x1x16xf32>
    %101 = vector.shape_cast %100 : vector<8x1x16xf32> to vector<8x16xf32>
    %102 = tpu.concatenate %71, %73, %75, %77, %79, %81, %83, %85, %87, %89, %91, %93, %95, %97, %99, %101 in 1 : vector<8x16xf32>, vector<8x16xf32>, vector<8x16xf32>, vector<8x16xf32>, vector<8x16xf32>, vector<8x16xf32>, vector<8x16xf32>, vector<8x16xf32>, vector<8x16xf32>, vector<8x16xf32>, vector<8x16xf32>, vector<8x16xf32>, vector<8x16xf32>, vector<8x16xf32>, vector<8x16xf32>, vector<8x16xf32> -> vector<8x256xf32>
    %c0_10 = arith.constant 0 : index
    %c0_11 = arith.constant 0 : index
    %c256 = arith.constant 256 : index
    %103 = vector.load %arg5[%c0_10, %c0_11, %c256] : memref<1x8x512xf32, #tpu.memory_space<vmem>>, vector<1x8x256xf32>
    %104 = vector.shape_cast %103 : vector<1x8x256xf32> to vector<8x256xf32>
    %105 = vector.shape_cast %102 : vector<8x256xf32> to vector<1x8x256xf32>
    tpu.vector_store %arg5[%c0_10, %c0_11, %c256], %105 {strides = array<i32>} : memref<1x8x512xf32, #tpu.memory_space<vmem>>, vector<1x8x256xf32>,
    return
  }
  func.func @transform_0(%arg0: i32, %arg1: i32) -> (i32, i32, i32, i32) {
    %c0_i32 = arith.constant 0 : i32
    %c0_i32_0 = arith.constant 0 : i32
    %c0_i32_1 = arith.constant 0 : i32
    %c0_i32_2 = arith.constant 0 : i32
    return %arg0, %c0_i32, %c0_i32_0, %c0_i32_1 : i32, i32, i32, i32
  }
  func.func @transform_1(%arg0: i32, %arg1: i32) -> (i32, i32) {
    %c0_i32 = arith.constant 0 : i32
    %c0_i32_0 = arith.constant 0 : i32
    %c0_i32_1 = arith.constant 0 : i32
    return %c0_i32, %c0_i32_0 : i32, i32
  }
  func.func @transform_2(%arg0: i32, %arg1: i32) -> (i32, i32) {
    %c0_i32 = arith.constant 0 : i32
    %c0_i32_0 = arith.constant 0 : i32
    %c0_i32_1 = arith.constant 0 : i32
    return %c0_i32, %c0_i32_0 : i32, i32
  }
  func.func @transform_3(%arg0: i32, %arg1: i32) -> (i32, i32, i32) {
    %c0_i32 = arith.constant 0 : i32
    %c0_i32_0 = arith.constant 0 : i32
    return %arg0, %arg1, %c0_i32 : i32, i32, i32
  }
}

</mosaic_0001>

<llo_original>
// kernel: tile.9
$region0: #{tile.9}
  %s0 = inlined_call_operand.vmem [shape: f32[4,8], index: 0, kind: input, shape index: {}]
  %s1 = inlined_call_operand.vmem [shape: f32[1,32], index: 1, kind: output, shape index: {}]
  $region1: #{tile.9} parent=0
    #allocation0 [shape = 'u8[4096]{0}', space=vmem, size = 0x1000, scoped, tag = 'scoped mem for output reshape']
    #allocation1 [shape = 'u8[4096]{0}', space=vmem, size = 0x1000, scoped, tag = 'scoped mem for input reshape']
    %s3 = ssub.s32 16, 1
    %v4 = vld [vmem:[%s0] sm:%s3]
    %5 = vst [vmem:[#allocation1] sm:%s3] %v4
    %v6 = vld [vmem:[#allocation1] sm:$0x1]
    %vm7 = vcmask 64512
    %8 = vst.msk [vmem:[#allocation0] sm:$0x1] %vm7, %v6
    %s9 = scalar_lea.vmem [#allocation1], 3
    %v10 = vld [vmem:[%s9] sm:$0x1]
    %11 = vrot.lane.b32.xlu0 %v10, 24
    %v12 = vpop.permute.xlu0 %11
    %vm13 = vcmask 261312
    %14 = vst.msk [vmem:[#allocation0] sm:$0x1] %vm13, %v12
    %s15 = scalar_lea.vmem [#allocation1], 2
    %v16 = vld [vmem:[%s15] sm:$0x1]
    %17 = vrot.lane.b32.xlu0 %v16, 16
    %v18 = vpop.permute.xlu0 %17
    %vm19 = vcmask 195712
    %20 = vst.msk [vmem:[#allocation0] sm:$0x1] %vm19, %v18
    %s21 = scalar_lea.vmem [#allocation1], 1
    %v22 = vld [vmem:[%s21] sm:$0x1]
    %23 = vrot.lane.b32.xlu0 %v22, 8
    %v24 = vpop.permute.xlu0 %23
    %vm25 = vcmask 130112
    %26 = vst.msk [vmem:[#allocation0] sm:$0x1] %vm25, %v24
    %s28 = ssub.s32 2, 1
    %v29 = vld [vmem:[#allocation0] sm:%s28]
    %s31 = ssub.s32 2, 1
    %32 = vst [vmem:[%s1] sm:%s31] %v29

// kernel: tile.8
$region0: #{tile.8}
  #allocation0 [shape = 's32[1]{0}', space=sflag, size = 0x4, scoped, tag = 'scoped memory for tile.8']
  %s0 = inlined_call_operand.vmem [shape: f32[8], index: 0, kind: input, shape index: {}]
  %s1 = inlined_call_operand.vmem [shape: f32[4,8], index: 1, kind: output, shape index: {}]
  // Predicated region
  $region2: #{tile.8} parent=0 // pred_check
    _
  $region3: #{tile.8} parent=0 // pred_check_branch
    %3 = sbr.rel (0) target = $region5
  $region4: #{tile.8} parent=0 // pred_region
    _
  $region5: #{tile.8} parent=0 // pred_fallthru
    _
  %v4 = vld [vmem:[%s0] ss:$0 sm:$0xff]
  %5 = vst [vmem:[%s1] sm:$0xf] %v4

// kernel: skip_upconv_nhwc.1
$region0: #{skip_upconv_nhwc.1}
  #allocation0 [shape = 'u32[]', space=smem, size = 0x4, offset = 0x4, fixed_abs, tag = 'smem constant byte address 0x4 - core index']
  #allocation1 [shape = 'u32[72,128]{1,0:T(1,128)}', space=vmem, size = 0x9000, scoped, tag = 'internal scratch']
  %s0 = inlined_call_operand.vmem [shape: f32[2,18,18,8], index: 0, kind: input, shape index: {}]
  %s1 = inlined_call_operand.vmem [shape: f32[72,32], index: 1, kind: input, shape index: {}]
  %s2 = inlined_call_operand.vmem [shape: f32[1,32], index: 2, kind: input, shape index: {}]
  %s3 = inlined_call_operand.vmem [shape: f32[2,16,512], index: 3, kind: output, shape index: {}]
  %s4 = sld [smem:[#allocation0]]
  $region45: #{skip_upconv_nhwc.1} parent=0
    _
  %s6 = ssub.s32 1, %s4
  %s7 = scalar_select 0, %s6, %s4
  loop: start=0, step=1, limit=6
  $region2: #{skip_upconv_nhwc.1} parent=0 // loop_pre_header
    _
  $region3: #{skip_upconv_nhwc.1} parent=0 // loop_header
    %s9 = sphi 0, %s13
    %p10 = scmp.ge.s32.totalorder %s9, 6
    %s16 = sphi 0, %s28
    %s17 = sphi 0, %s24
    %s18 = sphi 0, %s16
    %s19 = sphi 0, %s17
    %s20 = sphi 0, %s18
    %s21 = sphi 0, %s19
    %s31 = sphi 0, %s33
    %s34 = sphi 0, %s31
    %s35 = sphi 0, %s34
    %s51 = sphi 0, %s35
    %s55 = sphi 0, %s55
    %s57 = sphi 0, %s55
    %s58 = sphi 0, %s57
    %s72 = sphi 0, %s58
    %s76 = sphi 0, %s76
    %s78 = sphi 0, %s76
    %s79 = sphi 0, %s78
    %s93 = sphi 0, %s79
    %s101 = sphi 0, %s103
    %s104 = sphi 0, %s101
    %s105 = sphi 0, %s104
    %s121 = sphi 0, %s105
  $region4: #{skip_upconv_nhwc.1} parent=0 // loop_header_branch
    %12 = sbr.rel (%p10) target = $region8
  $region5: #{skip_upconv_nhwc.1} parent=0 // loop_body
    %s14 = ssub.s32 %s9, 1
    %s15 = ssub.s32 %s9, 2
    %s22 = sadd.s32 1, %s17
    %p23 = scmp.ge.s32.totalorder %s22, 2
    %s24 = scalar_select %p23, 0, %s22
    %s25 = sadd.s32 1, %s16
    %s26 = scalar_select %p23, %s25, %s16
    %p27 = scmp.ge.s32.totalorder %s26, 2
    %s28 = scalar_select %p27, 0, %s26
    %s29 = ssub.s32 %s16, %s28
    %p30 = scmp.eq.s32.totalorder %s29, 0
    %s32 = sadd.s32 %s31, 1
    %s33 = scalar_select %p30, %s31, %s32
    %p36 = pneg %p30
    %p37 = scmp.eq.s32.totalorder %s9, 3
    %p38 = por %p36, %p37
    %p39 = scmp.ne.s32.totalorder %s31, %s34
    %p40 = scmp.eq.s32.totalorder %s9, 0
    %p41 = por %p39, %p40
    %p42 = scmp.ne.s32.totalorder %s31, %s34
    %p43 = scmp.eq.s32.totalorder %s14, 3
    %p44 = por %p42, %p43
    %p45 = scmp.ne.s32.totalorder %s34, %s35
    %p46 = scmp.eq.s32.totalorder %s14, 0
    %p47 = por %p45, %p46
    %p48 = scmp.ne.s32.totalorder %s34, %s35
    %p49 = scmp.eq.s32.totalorder %s15, 3
    %p50 = por %p48, %p49
    %p52 = scmp.ne.s32.totalorder %s35, %s51
    %p53 = scmp.eq.s32.totalorder %s15, 0
    %p54 = por %p52, %p53
    %s56 = sadd.s32 %s55, 1
    %p59 = scmp.eq.s32.totalorder %s9, 3
    %p60 = scmp.ne.s32.totalorder %s55, %s57
    %p61 = scmp.eq.s32.totalorder %s9, 0
    %p62 = por %p60, %p61
    %p63 = scmp.ne.s32.totalorder %s55, %s57
    %p64 = scmp.eq.s32.totalorder %s14, 3
    %p65 = por %p63, %p64
    %p66 = scmp.ne.s32.totalorder %s57, %s58
    %p67 = scmp.eq.s32.totalorder %s14, 0
    %p68 = por %p66, %p67
    %p69 = scmp.ne.s32.totalorder %s57, %s58
    %p70 = scmp.eq.s32.totalorder %s15, 3
    %p71 = por %p69, %p70
    %p73 = scmp.ne.s32.totalorder %s58, %s72
    %p74 = scmp.eq.s32.totalorder %s15, 0
    %p75 = por %p73, %p74
    %s77 = sadd.s32 %s76, 1
    %p80 = scmp.eq.s32.totalorder %s9, 3
    %p81 = scmp.ne.s32.totalorder %s76, %s78
    %p82 = scmp.eq.s32.totalorder %s9, 0
    %p83 = por %p81, %p82
    %p84 = scmp.ne.s32.totalorder %s76, %s78
    %p85 = scmp.eq.s32.totalorder %s14, 3
    %p86 = por %p84, %p85
    %p87 = scmp.ne.s32.totalorder %s78, %s79
    %p88 = scmp.eq.s32.totalorder %s14, 0
    %p89 = por %p87, %p88
    %p90 = scmp.ne.s32.totalorder %s78, %s79
    %p91 = scmp.eq.s32.totalorder %s15, 3
    %p92 = por %p90, %p91
    %p94 = scmp.ne.s32.totalorder %s79, %s93
    %p95 = scmp.eq.s32.totalorder %s15, 0
    %p96 = por %p94, %p95
    %s97 = ssub.s32 %s16, %s28
    %s98 = ssub.s32 %s17, %s24
    %s99 = sor.u32 %s97, %s98
    %p100 = scmp.eq.s32.totalorder %s99, 0
    %s102 = sadd.s32 %s101, 1
    %s103 = scalar_select %p100, %s101, %s102
    %p106 = pneg %p100
    %p107 = scmp.eq.s32.totalorder %s9, 3
    %p108 = por %p106, %p107
    %p109 = scmp.ne.s32.totalorder %s101, %s104
    %p110 = scmp.eq.s32.totalorder %s9, 0
    %p111 = por %p109, %p110
    %p112 = scmp.ne.s32.totalorder %s101, %s104
    %p113 = scmp.eq.s32.totalorder %s14, 3
    %p114 = por %p112, %p113
    %p115 = scmp.ne.s32.totalorder %s104, %s105
    %p116 = scmp.eq.s32.totalorder %s14, 0
    %p117 = por %p115, %p116
    %p118 = scmp.ne.s32.totalorder %s104, %s105
    %p119 = scmp.eq.s32.totalorder %s15, 3
    %p120 = por %p118, %p119
    %p122 = scmp.ne.s32.totalorder %s105, %s121
    %p123 = scmp.eq.s32.totalorder %s15, 0
    %p124 = por %p122, %p123
    %p125 = scmp.le.s32.totalorder 1, %s9
    %p126 = scmp.lt.s32.totalorder %s9, 5
    %p127 = pnand %p125, %p126
    %p128 = pneg %p127
    // Predicated region
    $region9: #{skip_upconv_nhwc.1} parent=5 // pred_check
      _
    $region10: #{skip_upconv_nhwc.1} parent=5 // pred_check_branch
      %130 = sbr.rel (%p127) target = $region12
    $region11: #{skip_upconv_nhwc.1} parent=5 // pred_region
      %s131 = ssub.s32 %s9, 1
      // Predicated region
      $region13: #{skip_upconv_nhwc.1} parent=11 // pred_check
        %p132 = pneg %p68
      $region14: #{skip_upconv_nhwc.1} parent=11 // pred_check_branch
        %134 = sbr.rel (%p132) target = $region16
      $region15: #{skip_upconv_nhwc.1} parent=11 // pred_region
        _
      $region16: #{skip_upconv_nhwc.1} parent=11 // pred_fallthru
        _
      // Predicated region
      $region17: #{skip_upconv_nhwc.1} parent=11 // pred_check
        %p135 = pneg %p89
      $region18: #{skip_upconv_nhwc.1} parent=11 // pred_check_branch
        %137 = sbr.rel (%p135) target = $region20
      $region19: #{skip_upconv_nhwc.1} parent=11 // pred_region
        _
      $region20: #{skip_upconv_nhwc.1} parent=11 // pred_fallthru
        _
    $region12: #{skip_upconv_nhwc.1} parent=5 // pred_fallthru
      _
    %p138 = scmp.lt.s32.totalorder %s9, 4
    // Predicated region
    $region21: #{skip_upconv_nhwc.1} parent=5 // pred_check
      %p139 = pneg %p138
    $region22: #{skip_upconv_nhwc.1} parent=5 // pred_check_branch
      %141 = sbr.rel (%p139) target = $region24
    $region23: #{skip_upconv_nhwc.1} parent=5 // pred_region
      // Predicated region
      $region25: #{skip_upconv_nhwc.1} parent=23 // pred_check
        %p142 = pneg %p41
      $region26: #{skip_upconv_nhwc.1} parent=23 // pred_check_branch
        %144 = sbr.rel (%p142) target = $region28
      $region27: #{skip_upconv_nhwc.1} parent=23 // pred_region
        %p145 = scmp.lt.s32.totalorder %s16, 1
        %s146 = scalar_select %p145, %s16, 1
        %s147 = smul.addr %s146, 54
        %s148 = smul.addr %s147, 8
        %s149 = scalar_lea.vmem %s0, %s148
      $region28: #{skip_upconv_nhwc.1} parent=23 // pred_fallthru
        _
    $region24: #{skip_upconv_nhwc.1} parent=5 // pred_fallthru
      _
    %p150 = scmp.le.s32.totalorder 1, %s9
    %p151 = scmp.lt.s32.totalorder %s9, 5
    %p152 = pnand %p150, %p151
    %p153 = pneg %p152
    // Predicated region
    $region29: #{skip_upconv_nhwc.1} parent=5 // pred_check
      _
    $region30: #{skip_upconv_nhwc.1} parent=5 // pred_check_branch
      %155 = sbr.rel (%p152) target = $region32
    $region31: #{skip_upconv_nhwc.1} parent=5 // pred_region
      %s156 = ssub.s32 %s9, 1
      %p157 = scmp.lt.s32.totalorder %s18, 1
      %s158 = scalar_select %p157, %s18, 1
      %s159 = smul.addr %s158, 54
      %s160 = smul.addr %s159, 8
      %s161 = scalar_lea.vmem %s0, %s160
      %p162 = pneg %p47
      %p163 = pneg %p44
      %p164 = pneg %p68
      %p165 = pneg %p65
      %p166 = pneg %p89
      %p167 = pneg %p86
      %p168 = pneg %p117
      %p169 = pneg %p114
      %p170 = scmp.lt.s32.totalorder %s18, 1
      %s171 = scalar_select %p170, %s18, 1
      %p172 = scmp.lt.s32.totalorder %s19, 1
      %s173 = scalar_select %p172, %s19, 1
      %s174 = smul.addr %s173, 4
      %s175 = smul.addr %s171, 8
      %s176 = sadd.s32 %s174, %s175
      %s177 = smul.addr %s176, 8
      %s178 = scalar_lea.vmem %s3, %s177
      %p179 = scmp.lt.s32.totalorder %s18, 1
      %s180 = scalar_select %p179, %s18, 1
      %s181 = smul.addr %s180, 54
      %s182 = smul.addr %s181, 8
      %s183 = scalar_lea.vmem %s0, %s182
      %p184 = scmp.lt.s32.totalorder %s18, 1
      %s185 = scalar_select %p184, %s18, 1
      %p186 = scmp.lt.s32.totalorder %s19, 1
      %s187 = scalar_select %p186, %s19, 1
      %s188 = smul.addr %s187, 4
      %s189 = smul.addr %s185, 8
      %s190 = sadd.s32 %s188, %s189
      %s191 = smul.addr %s190, 8
      %s192 = scalar_lea.vmem %s3, %s191
      %s193 = smul.u32 %s19, 8
      %s194 = smul.u32 %s193, 24
      %s195 = scalar_lea.vmem %s183, %s194
      %v196 = vld [vmem:[%s195] sm:$0xff]
      %v197 = vld [vmem:[%s195 + $0x8] sm:$0xff]
      %v198 = vld [vmem:[%s195 + $0x10] sm:$0x3]
      %v199 = vld [vmem:[%s195 + $0x18] sm:$0xff]
      %v200 = vld [vmem:[%s195 + $0x20] sm:$0xff]
      %v201 = vld [vmem:[%s195 + $0x28] sm:$0x3]
      %v202 = vld [vmem:[%s195 + $0x30] sm:$0xff]
      %v203 = vld [vmem:[%s195 + $0x38] sm:$0xff]
      %v204 = vld [vmem:[%s195 + $0x40] sm:$0x3]
      %v205 = vld [vmem:[%s195 + $0x48] sm:$0xff]
      %v206 = vld [vmem:[%s195 + $0x50] sm:$0xff]
      %v207 = vld [vmem:[%s195 + $0x58] sm:$0x3]
      %v208 = vld [vmem:[%s195 + $0x60] sm:$0xff]
      %v209 = vld [vmem:[%s195 + $0x68] sm:$0xff]
      %v210 = vld [vmem:[%s195 + $0x70] sm:$0x3]
      %v211 = vld [vmem:[%s195 + $0x78] sm:$0xff]
      %v212 = vld [vmem:[%s195 + $0x80] sm:$0xff]
      %v213 = vld [vmem:[%s195 + $0x88] sm:$0x3]
      %v214 = vld [vmem:[%s195 + $0x90] sm:$0xff]
      %v215 = vld [vmem:[%s195 + $0x98] sm:$0xff]
      %v216 = vld [vmem:[%s195 + $0xa0] sm:$0x3]
      %v217 = vld [vmem:[%s195 + $0xa8] sm:$0xff]
      %v218 = vld [vmem:[%s195 + $0xb0] sm:$0xff]
      %v219 = vld [vmem:[%s195 + $0xb8] sm:$0x3]
      %v220 = vld [vmem:[%s195 + $0xc0] sm:$0xff]
      %v221 = vld [vmem:[%s195 + $0xc8] sm:$0xff]
      %v222 = vld [vmem:[%s195 + $0xd0] sm:$0x3]
      %v223 = vld [vmem:[%s195 + $0xd8] sm:$0xff]
      %v224 = vld [vmem:[%s195 + $0xe0] sm:$0xff]
      %v225 = vld [vmem:[%s195 + $0xe8] sm:$0x3]
      %vm250 = vcmask 1046528
      %v251 = vrot.slane %v196, 1
      %v252 = vrot.slane %v197, 1
      %v253 = vsel %vm250, %v251, %v252
      %v254 = vrot.slane %v198, 1
      %v255 = vsel %vm250, %v252, %v254
      %v256 = vrot.slane %v199, 1
      %v257 = vrot.slane %v200, 1
      %v258 = vsel %vm250, %v256, %v257
      %v259 = vrot.slane %v201, 1
      %v260 = vsel %vm250, %v257, %v259
      %v261 = vrot.slane %v202, 1
      %v262 = vrot.slane %v203, 1
      %v263 = vsel %vm250, %v261, %v262
      %v264 = vrot.slane %v204, 1
      %v265 = vsel %vm250, %v262, %v264
      %v266 = vrot.slane %v205, 1
      %v267 = vrot.slane %v206, 1
      %v268 = vsel %vm250, %v266, %v267
      %v269 = vrot.slane %v207, 1
      %v270 = vsel %vm250, %v267, %v269
      %v271 = vrot.slane %v208, 1
      %v272 = vrot.slane %v209, 1
      %v273 = vsel %vm250, %v271, %v272
      %v274 = vrot.slane %v210, 1
      %v275 = vsel %vm250, %v272, %v274
      %v276 = vrot.slane %v211, 1
      %v277 = vrot.slane %v212, 1
      %v278 = vsel %vm250, %v276, %v277
      %v279 = vrot.slane %v213, 1
      %v280 = vsel %vm250, %v277, %v279
      %v281 = vrot.slane %v214, 1
      %v282 = vrot.slane %v215, 1
      %v283 = vsel %vm250, %v281, %v282
      %v284 = vrot.slane %v216, 1
      %v285 = vsel %vm250, %v282, %v284
      %v286 = vrot.slane %v217, 1
      %v287 = vrot.slane %v218, 1
      %v288 = vsel %vm250, %v286, %v287
      %v289 = vrot.slane %v219, 1
      %v290 = vsel %vm250, %v287, %v289
      %vm291 = vcmask 1045504
      %v292 = vrot.slane %v196, 2
      %v293 = vrot.slane %v197, 2
      %v294 = vsel %vm291, %v292, %v293
      %v295 = vrot.slane %v198, 2
      %v296 = vsel %vm291, %v293, %v295
      %v297 = vrot.slane %v199, 2
      %v298 = vrot.slane %v200, 2
      %v299 = vsel %vm291, %v297, %v298
      %v300 = vrot.slane %v201, 2
      %v301 = vsel %vm291, %v298, %v300
      %v302 = vrot.slane %v202, 2
      %v303 = vrot.slane %v203, 2
      %v304 = vsel %vm291, %v302, %v303
      %v305 = vrot.slane %v204, 2
      %v306 = vsel %vm291, %v303, %v305
      %v307 = vrot.slane %v205, 2
      %v308 = vrot.slane %v206, 2
      %v309 = vsel %vm291, %v307, %v308
      %v310 = vrot.slane %v207, 2
      %v311 = vsel %vm291, %v308, %v310
      %v312 = vrot.slane %v208, 2
      %v313 = vrot.slane %v209, 2
      %v314 = vsel %vm291, %v312, %v313
      %v315 = vrot.slane %v210, 2
      %v316 = vsel %vm291, %v313, %v315
      %v317 = vrot.slane %v211, 2
      %v318 = vrot.slane %v212, 2
      %v319 = vsel %vm291, %v317, %v318
      %v320 = vrot.slane %v213, 2
      %v321 = vsel %vm291, %v318, %v320
      %v322 = vrot.slane %v214, 2
      %v323 = vrot.slane %v215, 2
      %v324 = vsel %vm291, %v322, %v323
      %v325 = vrot.slane %v216, 2
      %v326 = vsel %vm291, %v323, %v325
      %v327 = vrot.slane %v217, 2
      %v328 = vrot.slane %v218, 2
      %v329 = vsel %vm291, %v327, %v328
      %v330 = vrot.slane %v219, 2
      %v331 = vsel %vm291, %v328, %v330
      %v335 = vrot.slane %v220, 1
      %v336 = vrot.slane %v221, 1
      %v337 = vsel %vm250, %v335, %v336
      %v338 = vrot.slane %v222, 1
      %v339 = vsel %vm250, %v336, %v338
      %v340 = vrot.slane %v220, 2
      %v341 = vrot.slane %v221, 2
      %v342 = vsel %vm291, %v340, %v341
      %v343 = vrot.slane %v222, 2
      %v344 = vsel %vm291, %v341, %v343
      %v348 = vrot.slane %v223, 1
      %v349 = vrot.slane %v224, 1
      %v350 = vsel %vm250, %v348, %v349
      %v351 = vrot.slane %v225, 1
      %v352 = vsel %vm250, %v349, %v351
      %v353 = vrot.slane %v223, 2
      %v354 = vrot.slane %v224, 2
      %v355 = vsel %vm291, %v353, %v354
      %v356 = vrot.slane %v225, 2
      %v357 = vsel %vm291, %v354, %v356
      %358 = vrot.lane.b32.xlu0 %v253, 8
      %v359 = vpop.permute.xlu0 %358
      %360 = vrot.lane.b32.xlu0 %v255, 8
      %v361 = vpop.permute.xlu0 %360
      %362 = vrot.lane.b32.xlu0 %v258, 8
      %v363 = vpop.permute.xlu0 %362
      %364 = vrot.lane.b32.xlu0 %v260, 8
      %v365 = vpop.permute.xlu0 %364
      %366 = vrot.lane.b32.xlu0 %v263, 8
      %v367 = vpop.permute.xlu0 %366
      %368 = vrot.lane.b32.xlu0 %v265, 8
      %v369 = vpop.permute.xlu0 %368
      %370 = vrot.lane.b32.xlu0 %v268, 8
      %v371 = vpop.permute.xlu0 %370
      %372 = vrot.lane.b32.xlu0 %v270, 8
      %v373 = vpop.permute.xlu0 %372
      %374 = vrot.lane.b32.xlu0 %v273, 8
      %v375 = vpop.permute.xlu0 %374
      %376 = vrot.lane.b32.xlu0 %v275, 8
      %v377 = vpop.permute.xlu0 %376
      %378 = vrot.lane.b32.xlu0 %v278, 8
      %v379 = vpop.permute.xlu0 %378
      %380 = vrot.lane.b32.xlu0 %v280, 8
      %v381 = vpop.permute.xlu0 %380
      %382 = vrot.lane.b32.xlu0 %v283, 8
      %v383 = vpop.permute.xlu0 %382
      %384 = vrot.lane.b32.xlu0 %v285, 8
      %v385 = vpop.permute.xlu0 %384
      %386 = vrot.lane.b32.xlu0 %v288, 8
      %v387 = vpop.permute.xlu0 %386
      %388 = vrot.lane.b32.xlu0 %v290, 8
      %v389 = vpop.permute.xlu0 %388
      %406 = vrot.lane.b32.xlu0 %v294, 16
      %v407 = vpop.permute.xlu0 %406
      %408 = vrot.lane.b32.xlu0 %v296, 16
      %v409 = vpop.permute.xlu0 %408
      %410 = vrot.lane.b32.xlu0 %v299, 16
      %v411 = vpop.permute.xlu0 %410
      %412 = vrot.lane.b32.xlu0 %v301, 16
      %v413 = vpop.permute.xlu0 %412
      %414 = vrot.lane.b32.xlu0 %v304, 16
      %v415 = vpop.permute.xlu0 %414
      %416 = vrot.lane.b32.xlu0 %v306, 16
      %v417 = vpop.permute.xlu0 %416
      %418 = vrot.lane.b32.xlu0 %v309, 16
      %v419 = vpop.permute.xlu0 %418
      %420 = vrot.lane.b32.xlu0 %v311, 16
      %v421 = vpop.permute.xlu0 %420
      %422 = vrot.lane.b32.xlu0 %v314, 16
      %v423 = vpop.permute.xlu0 %422
      %424 = vrot.lane.b32.xlu0 %v316, 16
      %v425 = vpop.permute.xlu0 %424
      %426 = vrot.lane.b32.xlu0 %v319, 16
      %v427 = vpop.permute.xlu0 %426
      %428 = vrot.lane.b32.xlu0 %v321, 16
      %v429 = vpop.permute.xlu0 %428
      %430 = vrot.lane.b32.xlu0 %v324, 16
      %v431 = vpop.permute.xlu0 %430
      %432 = vrot.lane.b32.xlu0 %v326, 16
      %v433 = vpop.permute.xlu0 %432
      %434 = vrot.lane.b32.xlu0 %v329, 16
      %v435 = vpop.permute.xlu0 %434
      %436 = vrot.lane.b32.xlu0 %v331, 16
      %v437 = vpop.permute.xlu0 %436
      %454 = vrot.lane.b32.xlu0 %v199, 24
      %v455 = vpop.permute.xlu0 %454
      %456 = vrot.lane.b32.xlu0 %v200, 24
      %v457 = vpop.permute.xlu0 %456
      %458 = vrot.lane.b32.xlu0 %v202, 24
      %v459 = vpop.permute.xlu0 %458
      %460 = vrot.lane.b32.xlu0 %v203, 24
      %v461 = vpop.permute.xlu0 %460
      %462 = vrot.lane.b32.xlu0 %v205, 24
      %v463 = vpop.permute.xlu0 %462
      %464 = vrot.lane.b32.xlu0 %v206, 24
      %v465 = vpop.permute.xlu0 %464
      %466 = vrot.lane.b32.xlu0 %v208, 24
      %v467 = vpop.permute.xlu0 %466
      %468 = vrot.lane.b32.xlu0 %v209, 24
      %v469 = vpop.permute.xlu0 %468
      %470 = vrot.lane.b32.xlu0 %v211, 24
      %v471 = vpop.permute.xlu0 %470
      %472 = vrot.lane.b32.xlu0 %v212, 24
      %v473 = vpop.permute.xlu0 %472
      %474 = vrot.lane.b32.xlu0 %v214, 24
      %v475 = vpop.permute.xlu0 %474
      %476 = vrot.lane.b32.xlu0 %v215, 24
      %v477 = vpop.permute.xlu0 %476
      %478 = vrot.lane.b32.xlu0 %v217, 24
      %v479 = vpop.permute.xlu0 %478
      %480 = vrot.lane.b32.xlu0 %v218, 24
      %v481 = vpop.permute.xlu0 %480
      %482 = vrot.lane.b32.xlu0 %v220, 24
      %v483 = vpop.permute.xlu0 %482
      %484 = vrot.lane.b32.xlu0 %v221, 24
      %v485 = vpop.permute.xlu0 %484
      %502 = vrot.lane.b32.xlu0 %v258, 32
      %v503 = vpop.permute.xlu0 %502
      %504 = vrot.lane.b32.xlu0 %v260, 32
      %v505 = vpop.permute.xlu0 %504
      %506 = vrot.lane.b32.xlu0 %v263, 32
      %v507 = vpop.permute.xlu0 %506
      %508 = vrot.lane.b32.xlu0 %v265, 32
      %v509 = vpop.permute.xlu0 %508
      %510 = vrot.lane.b32.xlu0 %v268, 32
      %v511 = vpop.permute.xlu0 %510
      %512 = vrot.lane.b32.xlu0 %v270, 32
      %v513 = vpop.permute.xlu0 %512
      %514 = vrot.lane.b32.xlu0 %v273, 32
      %v515 = vpop.permute.xlu0 %514
      %516 = vrot.lane.b32.xlu0 %v275, 32
      %v517 = vpop.permute.xlu0 %516
      %518 = vrot.lane.b32.xlu0 %v278, 32
      %v519 = vpop.permute.xlu0 %518
      %520 = vrot.lane.b32.xlu0 %v280, 32
      %v521 = vpop.permute.xlu0 %520
      %522 = vrot.lane.b32.xlu0 %v283, 32
      %v523 = vpop.permute.xlu0 %522
      %524 = vrot.lane.b32.xlu0 %v285, 32
      %v525 = vpop.permute.xlu0 %524
      %526 = vrot.lane.b32.xlu0 %v288, 32
      %v527 = vpop.permute.xlu0 %526
      %528 = vrot.lane.b32.xlu0 %v290, 32
      %v529 = vpop.permute.xlu0 %528
      %530 = vrot.lane.b32.xlu0 %v337, 32
      %v531 = vpop.permute.xlu0 %530
      %532 = vrot.lane.b32.xlu0 %v339, 32
      %v533 = vpop.permute.xlu0 %532
      %550 = vrot.lane.b32.xlu0 %v299, 40
      %v551 = vpop.permute.xlu0 %550
      %552 = vrot.lane.b32.xlu0 %v301, 40
      %v553 = vpop.permute.xlu0 %552
      %554 = vrot.lane.b32.xlu0 %v304, 40
      %v555 = vpop.permute.xlu0 %554
      %556 = vrot.lane.b32.xlu0 %v306, 40
      %v557 = vpop.permute.xlu0 %556
      %558 = vrot.lane.b32.xlu0 %v309, 40
      %v559 = vpop.permute.xlu0 %558
      %560 = vrot.lane.b32.xlu0 %v311, 40
      %v561 = vpop.permute.xlu0 %560
      %562 = vrot.lane.b32.xlu0 %v314, 40
      %v563 = vpop.permute.xlu0 %562
      %564 = vrot.lane.b32.xlu0 %v316, 40
      %v565 = vpop.permute.xlu0 %564
      %566 = vrot.lane.b32.xlu0 %v319, 40
      %v567 = vpop.permute.xlu0 %566
      %568 = vrot.lane.b32.xlu0 %v321, 40
      %v569 = vpop.permute.xlu0 %568
      %570 = vrot.lane.b32.xlu0 %v324, 40
      %v571 = vpop.permute.xlu0 %570
      %572 = vrot.lane.b32.xlu0 %v326, 40
      %v573 = vpop.permute.xlu0 %572
      %574 = vrot.lane.b32.xlu0 %v329, 40
      %v575 = vpop.permute.xlu0 %574
      %576 = vrot.lane.b32.xlu0 %v331, 40
      %v577 = vpop.permute.xlu0 %576
      %578 = vrot.lane.b32.xlu0 %v342, 40
      %v579 = vpop.permute.xlu0 %578
      %580 = vrot.lane.b32.xlu0 %v344, 40
      %v581 = vpop.permute.xlu0 %580
      %598 = vrot.lane.b32.xlu0 %v202, 48
      %v599 = vpop.permute.xlu0 %598
      %600 = vrot.lane.b32.xlu0 %v203, 48
      %v601 = vpop.permute.xlu0 %600
      %602 = vrot.lane.b32.xlu0 %v205, 48
      %v603 = vpop.permute.xlu0 %602
      %604 = vrot.lane.b32.xlu0 %v206, 48
      %v605 = vpop.permute.xlu0 %604
      %606 = vrot.lane.b32.xlu0 %v208, 48
      %v607 = vpop.permute.xlu0 %606
      %608 = vrot.lane.b32.xlu0 %v209, 48
      %v609 = vpop.permute.xlu0 %608
      %610 = vrot.lane.b32.xlu0 %v211, 48
      %v611 = vpop.permute.xlu0 %610
      %612 = vrot.lane.b32.xlu0 %v212, 48
      %v613 = vpop.permute.xlu0 %612
      %614 = vrot.lane.b32.xlu0 %v214, 48
      %v615 = vpop.permute.xlu0 %614
      %616 = vrot.lane.b32.xlu0 %v215, 48
      %v617 = vpop.permute.xlu0 %616
      %618 = vrot.lane.b32.xlu0 %v217, 48
      %v619 = vpop.permute.xlu0 %618
      %620 = vrot.lane.b32.xlu0 %v218, 48
      %v621 = vpop.permute.xlu0 %620
      %622 = vrot.lane.b32.xlu0 %v220, 48
      %v623 = vpop.permute.xlu0 %622
      %624 = vrot.lane.b32.xlu0 %v221, 48
      %v625 = vpop.permute.xlu0 %624
      %626 = vrot.lane.b32.xlu0 %v223, 48
      %v627 = vpop.permute.xlu0 %626
      %628 = vrot.lane.b32.xlu0 %v224, 48
      %v629 = vpop.permute.xlu0 %628
      %646 = vrot.lane.b32.xlu0 %v263, 56
      %v647 = vpop.permute.xlu0 %646
      %648 = vrot.lane.b32.xlu0 %v265, 56
      %v649 = vpop.permute.xlu0 %648
      %650 = vrot.lane.b32.xlu0 %v268, 56
      %v651 = vpop.permute.xlu0 %650
      %652 = vrot.lane.b32.xlu0 %v270, 56
      %v653 = vpop.permute.xlu0 %652
      %654 = vrot.lane.b32.xlu0 %v273, 56
      %v655 = vpop.permute.xlu0 %654
      %656 = vrot.lane.b32.xlu0 %v275, 56
      %v657 = vpop.permute.xlu0 %656
      %658 = vrot.lane.b32.xlu0 %v278, 56
      %v659 = vpop.permute.xlu0 %658
      %660 = vrot.lane.b32.xlu0 %v280, 56
      %v661 = vpop.permute.xlu0 %660
      %662 = vrot.lane.b32.xlu0 %v283, 56
      %v663 = vpop.permute.xlu0 %662
      %664 = vrot.lane.b32.xlu0 %v285, 56
      %v665 = vpop.permute.xlu0 %664
      %666 = vrot.lane.b32.xlu0 %v288, 56
      %v667 = vpop.permute.xlu0 %666
      %668 = vrot.lane.b32.xlu0 %v290, 56
      %v669 = vpop.permute.xlu0 %668
      %670 = vrot.lane.b32.xlu0 %v337, 56
      %v671 = vpop.permute.xlu0 %670
      %672 = vrot.lane.b32.xlu0 %v339, 56
      %v673 = vpop.permute.xlu0 %672
      %674 = vrot.lane.b32.xlu0 %v350, 56
      %v675 = vpop.permute.xlu0 %674
      %676 = vrot.lane.b32.xlu0 %v352, 56
      %v677 = vpop.permute.xlu0 %676
      %694 = vrot.lane.b32.xlu0 %v304, 64
      %v695 = vpop.permute.xlu0 %694
      %696 = vrot.lane.b32.xlu0 %v306, 64
      %v697 = vpop.permute.xlu0 %696
      %698 = vrot.lane.b32.xlu0 %v309, 64
      %v699 = vpop.permute.xlu0 %698
      %700 = vrot.lane.b32.xlu0 %v311, 64
      %v701 = vpop.permute.xlu0 %700
      %702 = vrot.lane.b32.xlu0 %v314, 64
      %v703 = vpop.permute.xlu0 %702
      %704 = vrot.lane.b32.xlu0 %v316, 64
      %v705 = vpop.permute.xlu0 %704
      %706 = vrot.lane.b32.xlu0 %v319, 64
      %v707 = vpop.permute.xlu0 %706
      %708 = vrot.lane.b32.xlu0 %v321, 64
      %v709 = vpop.permute.xlu0 %708
      %710 = vrot.lane.b32.xlu0 %v324, 64
      %v711 = vpop.permute.xlu0 %710
      %712 = vrot.lane.b32.xlu0 %v326, 64
      %v713 = vpop.permute.xlu0 %712
      %714 = vrot.lane.b32.xlu0 %v329, 64
      %v715 = vpop.permute.xlu0 %714
      %716 = vrot.lane.b32.xlu0 %v331, 64
      %v717 = vpop.permute.xlu0 %716
      %718 = vrot.lane.b32.xlu0 %v342, 64
      %v719 = vpop.permute.xlu0 %718
      %720 = vrot.lane.b32.xlu0 %v344, 64
      %v721 = vpop.permute.xlu0 %720
      %722 = vrot.lane.b32.xlu0 %v355, 64
      %v723 = vpop.permute.xlu0 %722
      %724 = vrot.lane.b32.xlu0 %v357, 64
      %v725 = vpop.permute.xlu0 %724
      %vm742 = vcmask 64512
      %v743 = vsel %vm742, %v196, %v359
      %v744 = vsel %vm742, %v197, %v361
      %v745 = vsel %vm742, %v199, %v363
      %v746 = vsel %vm742, %v200, %v365
      %v747 = vsel %vm742, %v202, %v367
      %v748 = vsel %vm742, %v203, %v369
      %v749 = vsel %vm742, %v205, %v371
      %v750 = vsel %vm742, %v206, %v373
      %v751 = vsel %vm742, %v208, %v375
      %v752 = vsel %vm742, %v209, %v377
      %v753 = vsel %vm742, %v211, %v379
      %v754 = vsel %vm742, %v212, %v381
      %v755 = vsel %vm742, %v214, %v383
      %v756 = vsel %vm742, %v215, %v385
      %v757 = vsel %vm742, %v217, %v387
      %v758 = vsel %vm742, %v218, %v389
      %vm759 = vcmask 130048
      %v760 = vsel %vm759, %v743, %v407
      %v761 = vsel %vm759, %v744, %v409
      %v762 = vsel %vm759, %v745, %v411
      %v763 = vsel %vm759, %v746, %v413
      %v764 = vsel %vm759, %v747, %v415
      %v765 = vsel %vm759, %v748, %v417
      %v766 = vsel %vm759, %v749, %v419
      %v767 = vsel %vm759, %v750, %v421
      %v768 = vsel %vm759, %v751, %v423
      %v769 = vsel %vm759, %v752, %v425
      %v770 = vsel %vm759, %v753, %v427
      %v771 = vsel %vm759, %v754, %v429
      %v772 = vsel %vm759, %v755, %v431
      %v773 = vsel %vm759, %v756, %v433
      %v774 = vsel %vm759, %v757, %v435
      %v775 = vsel %vm759, %v758, %v437
      %vm776 = vcmask 195584
      %v777 = vsel %vm776, %v760, %v455
      %v778 = vsel %vm776, %v761, %v457
      %v779 = vsel %vm776, %v762, %v459
      %v780 = vsel %vm776, %v763, %v461
      %v781 = vsel %vm776, %v764, %v463
      %v782 = vsel %vm776, %v765, %v465
      %v783 = vsel %vm776, %v766, %v467
      %v784 = vsel %vm776, %v767, %v469
      %v785 = vsel %vm776, %v768, %v471
      %v786 = vsel %vm776, %v769, %v473
      %v787 = vsel %vm776, %v770, %v475
      %v788 = vsel %vm776, %v771, %v477
      %v789 = vsel %vm776, %v772, %v479
      %v790 = vsel %vm776, %v773, %v481
      %v791 = vsel %vm776, %v774, %v483
      %v792 = vsel %vm776, %v775, %v485
      %vm793 = vcmask 261120
      %v794 = vsel %vm793, %v777, %v503
      %v795 = vsel %vm793, %v778, %v505
      %v796 = vsel %vm793, %v779, %v507
      %v797 = vsel %vm793, %v780, %v509
      %v798 = vsel %vm793, %v781, %v511
      %v799 = vsel %vm793, %v782, %v513
      %v800 = vsel %vm793, %v783, %v515
      %v801 = vsel %vm793, %v784, %v517
      %v802 = vsel %vm793, %v785, %v519
      %v803 = vsel %vm793, %v786, %v521
      %v804 = vsel %vm793, %v787, %v523
      %v805 = vsel %vm793, %v788, %v525
      %v806 = vsel %vm793, %v789, %v527
      %v807 = vsel %vm793, %v790, %v529
      %v808 = vsel %vm793, %v791, %v531
      %v809 = vsel %vm793, %v792, %v533
      %vm810 = vcmask 326656
      %v811 = vsel %vm810, %v794, %v551
      %v812 = vsel %vm810, %v795, %v553
      %v813 = vsel %vm810, %v796, %v555
      %v814 = vsel %vm810, %v797, %v557
      %v815 = vsel %vm810, %v798, %v559
      %v816 = vsel %vm810, %v799, %v561
      %v817 = vsel %vm810, %v800, %v563
      %v818 = vsel %vm810, %v801, %v565
      %v819 = vsel %vm810, %v802, %v567
      %v820 = vsel %vm810, %v803, %v569
      %v821 = vsel %vm810, %v804, %v571
      %v822 = vsel %vm810, %v805, %v573
      %v823 = vsel %vm810, %v806, %v575
      %v824 = vsel %vm810, %v807, %v577
      %v825 = vsel %vm810, %v808, %v579
      %v826 = vsel %vm810, %v809, %v581
      %vm827 = vcmask 392192
      %v828 = vsel %vm827, %v811, %v599
      %v829 = vsel %vm827, %v812, %v601
      %v830 = vsel %vm827, %v813, %v603
      %v831 = vsel %vm827, %v814, %v605
      %v832 = vsel %vm827, %v815, %v607
      %v833 = vsel %vm827, %v816, %v609
      %v834 = vsel %vm827, %v817, %v611
      %v835 = vsel %vm827, %v818, %v613
      %v836 = vsel %vm827, %v819, %v615
      %v837 = vsel %vm827, %v820, %v617
      %v838 = vsel %vm827, %v821, %v619
      %v839 = vsel %vm827, %v822, %v621
      %v840 = vsel %vm827, %v823, %v623
      %v841 = vsel %vm827, %v824, %v625
      %v842 = vsel %vm827, %v825, %v627
      %v843 = vsel %vm827, %v826, %v629
      %vm844 = vcmask 457728
      %v845 = vsel %vm844, %v828, %v647
      %v846 = vsel %vm844, %v829, %v649
      %v847 = vsel %vm844, %v830, %v651
      %v848 = vsel %vm844, %v831, %v653
      %v849 = vsel %vm844, %v832, %v655
      %v850 = vsel %vm844, %v833, %v657
      %v851 = vsel %vm844, %v834, %v659
      %v852 = vsel %vm844, %v835, %v661
      %v853 = vsel %vm844, %v836, %v663
      %v854 = vsel %vm844, %v837, %v665
      %v855 = vsel %vm844, %v838, %v667
      %v856 = vsel %vm844, %v839, %v669
      %v857 = vsel %vm844, %v840, %v671
      %v858 = vsel %vm844, %v841, %v673
      %v859 = vsel %vm844, %v842, %v675
      %v860 = vsel %vm844, %v843, %v677
      %vm861 = vcmask 523264
      %v862 = vsel %vm861, %v845, %v695
      %v863 = vsel %vm861, %v846, %v697
      %v864 = vsel %vm861, %v847, %v699
      %v865 = vsel %vm861, %v848, %v701
      %v866 = vsel %vm861, %v849, %v703
      %v867 = vsel %vm861, %v850, %v705
      %v868 = vsel %vm861, %v851, %v707
      %v869 = vsel %vm861, %v852, %v709
      %v870 = vsel %vm861, %v853, %v711
      %v871 = vsel %vm861, %v854, %v713
      %v872 = vsel %vm861, %v855, %v715
      %v873 = vsel %vm861, %v856, %v717
      %v874 = vsel %vm861, %v857, %v719
      %v875 = vsel %vm861, %v858, %v721
      %v876 = vsel %vm861, %v859, %v723
      %v877 = vsel %vm861, %v860, %v725
      %v878 = vld [vmem:[%s1] sm:$0xff]
      %v879 = vld [vmem:[%s1 + $0x8] sm:$0xff]
      %v880 = vld [vmem:[%s1 + $0x10] sm:$0xff]
      %v881 = vld [vmem:[%s1 + $0x18] sm:$0xff]
      %v882 = vld [vmem:[%s1 + $0x20] sm:$0xff]
      %v883 = vld [vmem:[%s1 + $0x28] sm:$0xff]
      %v884 = vld [vmem:[%s1 + $0x30] sm:$0xff]
      %v885 = vld [vmem:[%s1 + $0x38] sm:$0xff]
      %v886 = vld [vmem:[%s1 + $0x40] sm:$0xff]
      %v887 = vld [vmem:[%s2] sm:$0x1]
      %v889 = vperm.slane %v887, 0
      %vm891 = vcmask 588800
      %v893 = vsel %vm891, %v862, 0
      %v896 = vsel %vm891, %v863, 0
      %v899 = vsel %vm891, %v864, 0
      %v902 = vsel %vm891, %v865, 0
      %v905 = vsel %vm891, %v866, 0
      %v908 = vsel %vm891, %v867, 0
      %v911 = vsel %vm891, %v868, 0
      %v914 = vsel %vm891, %v869, 0
      %v917 = vsel %vm891, %v870, 0
      %v920 = vsel %vm891, %v871, 0
      %v923 = vsel %vm891, %v872, 0
      %v926 = vsel %vm891, %v873, 0
      %v929 = vsel %vm891, %v874, 0
      %v932 = vsel %vm891, %v875, 0
      %v935 = vsel %vm891, %v876, 0
      %v938 = vsel %vm891, %v877, 0
      %940 = vmatpush.msra.mxu0 0.0
      %941 = vmatpush.msra.mxu0 0.0
      %942 = vmatpush.msra.mxu0 0.0
      %943 = vmatpush.msra.mxu0 0.0
      %944 = vmatpush.msra.mxu0 0.0
      %945 = vmatpush.msra.mxu0 0.0
      %946 = vmatpush.msra.mxu0 0.0
      %947 = vmatpush.msra.mxu0 %v886
      %948 = vmatpush.msra.mxu0 %v885
      %949 = vmatpush.msra.mxu0 %v884
      %950 = vmatpush.msra.mxu0 %v883
      %951 = vmatpush.msra.mxu0 %v882
      %952 = vmatpush.msra.mxu0 %v881
      %953 = vmatpush.msra.mxu0 %v880
      %954 = vmatpush.msra.mxu0 %v879
      %955 = vmatpush.msra.mxu0 %v878
      %956 = vmatmul.f32.gmra.mxu0 %v893
      %v957 = vpop.f32.mrf.mxu0
      %v958 = vadd.f32 %v889, %v957
      %959 = vmatmul.f32.gmra.mxu0 %v896
      %v960 = vpop.f32.mrf.mxu0
      %v961 = vadd.f32 %v889, %v960
      %962 = vmatmul.f32.gmra.mxu0 %v899
      %v963 = vpop.f32.mrf.mxu0
      %v964 = vadd.f32 %v889, %v963
      %965 = vmatmul.f32.gmra.mxu0 %v902
      %v966 = vpop.f32.mrf.mxu0
      %v967 = vadd.f32 %v889, %v966
      %968 = vmatmul.f32.gmra.mxu0 %v905
      %v969 = vpop.f32.mrf.mxu0
      %v970 = vadd.f32 %v889, %v969
      %971 = vmatmul.f32.gmra.mxu0 %v908
      %v972 = vpop.f32.mrf.mxu0
      %v973 = vadd.f32 %v889, %v972
      %974 = vmatmul.f32.gmra.mxu0 %v911
      %v975 = vpop.f32.mrf.mxu0
      %v976 = vadd.f32 %v889, %v975
      %977 = vmatmul.f32.gmra.mxu0 %v914
      %v978 = vpop.f32.mrf.mxu0
      %v979 = vadd.f32 %v889, %v978
      %980 = vmatmul.f32.gmra.mxu0 %v917
      %v981 = vpop.f32.mrf.mxu0
      %v982 = vadd.f32 %v889, %v981
      %983 = vmatmul.f32.gmra.mxu0 %v920
      %v984 = vpop.f32.mrf.mxu0
      %v985 = vadd.f32 %v889, %v984
      %986 = vmatmul.f32.gmra.mxu0 %v923
      %v987 = vpop.f32.mrf.mxu0
      %v988 = vadd.f32 %v889, %v987
      %989 = vmatmul.f32.gmra.mxu0 %v926
      %v990 = vpop.f32.mrf.mxu0
      %v991 = vadd.f32 %v889, %v990
      %992 = vmatmul.f32.gmra.mxu0 %v929
      %v993 = vpop.f32.mrf.mxu0
      %v994 = vadd.f32 %v889, %v993
      %995 = vmatmul.f32.gmra.mxu0 %v932
      %v996 = vpop.f32.mrf.mxu0
      %v997 = vadd.f32 %v889, %v996
      %998 = vmatmul.f32.gmra.mxu0 %v935
      %v999 = vpop.f32.mrf.mxu0
      %v1000 = vadd.f32 %v889, %v999
      %1001 = vmatmul.f32.gmra.mxu0 %v938
      %v1002 = vpop.f32.mrf.mxu0
      %v1003 = vadd.f32 %v889, %v1002
      %1004 = vdwg.mxu0
      %v1005 = vmax.f32 %v958, 0.0
      %v1006 = vmax.f32 %v961, 0.0
      %v1007 = vmax.f32 %v964, 0.0
      %v1008 = vmax.f32 %v967, 0.0
      %v1009 = vmax.f32 %v970, 0.0
      %v1010 = vmax.f32 %v973, 0.0
      %v1011 = vmax.f32 %v976, 0.0
      %v1012 = vmax.f32 %v979, 0.0
      %v1013 = vmax.f32 %v982, 0.0
      %v1014 = vmax.f32 %v985, 0.0
      %v1015 = vmax.f32 %v988, 0.0
      %v1016 = vmax.f32 %v991, 0.0
      %v1017 = vmax.f32 %v994, 0.0
      %v1018 = vmax.f32 %v997, 0.0
      %v1019 = vmax.f32 %v1000, 0.0
      %v1020 = vmax.f32 %v1003, 0.0
      %v1029 = vrot.slane %v1007, 7
      %vm1030 = vcmask 1041409
      %v1031 = vsel %vm1030, %v1029, %v1005
      %v1032 = vrot.slane %v1009, 6
      %vm1033 = vcmask 1042434
      %v1034 = vsel %vm1033, %v1032, %v1031
      %v1035 = vrot.slane %v1011, 5
      %vm1036 = vcmask 1043459
      %v1037 = vsel %vm1036, %v1035, %v1034
      %v1038 = vrot.slane %v1013, 4
      %vm1039 = vcmask 1044484
      %v1040 = vsel %vm1039, %v1038, %v1037
      %v1041 = vrot.slane %v1015, 3
      %vm1042 = vcmask 1045509
      %v1043 = vsel %vm1042, %v1041, %v1040
      %v1044 = vrot.slane %v1017, 2
      %vm1045 = vcmask 1046534
      %v1046 = vsel %vm1045, %v1044, %v1043
      %v1047 = vrot.slane %v1019, 1
      %vm1048 = vcmask 1047559
      %v1049 = vsel %vm1048, %v1047, %v1046
      %v1051 = vrot.slane %v1005, 1
      %v1052 = vsel %vm1030, %v1007, %v1051
      %v1053 = vrot.slane %v1009, 7
      %v1054 = vsel %vm1033, %v1053, %v1052
      %v1055 = vrot.slane %v1011, 6
      %v1056 = vsel %vm1036, %v1055, %v1054
      %v1057 = vrot.slane %v1013, 5
      %v1058 = vsel %vm1039, %v1057, %v1056
      %v1059 = vrot.slane %v1015, 4
      %v1060 = vsel %vm1042, %v1059, %v1058
      %v1061 = vrot.slane %v1017, 3
      %v1062 = vsel %vm1045, %v1061, %v1060
      %v1063 = vrot.slane %v1019, 2
      %v1064 = vsel %vm1048, %v1063, %v1062
      %1065 = vrot.lane.b32.xlu0 %v1064, 16
      %v1066 = vpop.permute.xlu0 %1065
      %v1068 = vrot.slane %v1005, 2
      %v1069 = vrot.slane %v1007, 1
      %v1070 = vsel %vm1030, %v1069, %v1068
      %v1071 = vsel %vm1033, %v1009, %v1070
      %v1072 = vrot.slane %v1011, 7
      %v1073 = vsel %vm1036, %v1072, %v1071
      %v1074 = vrot.slane %v1013, 6
      %v1075 = vsel %vm1039, %v1074, %v1073
      %v1076 = vrot.slane %v1015, 5
      %v1077 = vsel %vm1042, %v1076, %v1075
      %v1078 = vrot.slane %v1017, 4
      %v1079 = vsel %vm1045, %v1078, %v1077
      %v1080 = vrot.slane %v1019, 3
      %v1081 = vsel %vm1048, %v1080, %v1079
      %1082 = vrot.lane.b32.xlu0 %v1081, 32
      %v1083 = vpop.permute.xlu0 %1082
      %v1085 = vrot.slane %v1005, 3
      %v1086 = vrot.slane %v1007, 2
      %v1087 = vsel %vm1030, %v1086, %v1085
      %v1088 = vrot.slane %v1009, 1
      %v1089 = vsel %vm1033, %v1088, %v1087
      %v1090 = vsel %vm1036, %v1011, %v1089
      %v1091 = vrot.slane %v1013, 7
      %v1092 = vsel %vm1039, %v1091, %v1090
      %v1093 = vrot.slane %v1015, 6
      %v1094 = vsel %vm1042, %v1093, %v1092
      %v1095 = vrot.slane %v1017, 5
      %v1096 = vsel %vm1045, %v1095, %v1094
      %v1097 = vrot.slane %v1019, 4
      %v1098 = vsel %vm1048, %v1097, %v1096
      %1099 = vrot.lane.b32.xlu0 %v1098, 48
      %v1100 = vpop.permute.xlu0 %1099
      %v1102 = vrot.slane %v1005, 4
      %v1103 = vrot.slane %v1007, 3
      %v1104 = vsel %vm1030, %v1103, %v1102
      %v1105 = vrot.slane %v1009, 2
      %v1106 = vsel %vm1033, %v1105, %v1104
      %v1107 = vrot.slane %v1011, 1
      %v1108 = vsel %vm1036, %v1107, %v1106
      %v1109 = vsel %vm1039, %v1013, %v1108
      %v1110 = vrot.slane %v1015, 7
      %v1111 = vsel %vm1042, %v1110, %v1109
      %v1112 = vrot.slane %v1017, 6
      %v1113 = vsel %vm1045, %v1112, %v1111
      %v1114 = vrot.slane %v1019, 5
      %v1115 = vsel %vm1048, %v1114, %v1113
      %1116 = vrot.lane.b32.xlu0 %v1115, 64
      %v1117 = vpop.permute.xlu0 %1116
      %v1119 = vrot.slane %v1005, 5
      %v1120 = vrot.slane %v1007, 4
      %v1121 = vsel %vm1030, %v1120, %v1119
      %v1122 = vrot.slane %v1009, 3
      %v1123 = vsel %vm1033, %v1122, %v1121
      %v1124 = vrot.slane %v1011, 2
      %v1125 = vsel %vm1036, %v1124, %v1123
      %v1126 = vrot.slane %v1013, 1
      %v1127 = vsel %vm1039, %v1126, %v1125
      %v1128 = vsel %vm1042, %v1015, %v1127
      %v1129 = vrot.slane %v1017, 7
      %v1130 = vsel %vm1045, %v1129, %v1128
      %v1131 = vrot.slane %v1019, 6
      %v1132 = vsel %vm1048, %v1131, %v1130
      %1133 = vrot.lane.b32.xlu0 %v1132, 80
      %v1134 = vpop.permute.xlu0 %1133
      %v1136 = vrot.slane %v1005, 6
      %v1137 = vrot.slane %v1007, 5
      %v1138 = vsel %vm1030, %v1137, %v1136
      %v1139 = vrot.slane %v1009, 4
      %v1140 = vsel %vm1033, %v1139, %v1138
      %v1141 = vrot.slane %v1011, 3
      %v1142 = vsel %vm1036, %v1141, %v1140
      %v1143 = vrot.slane %v1013, 2
      %v1144 = vsel %vm1039, %v1143, %v1142
      %v1145 = vrot.slane %v1015, 1
      %v1146 = vsel %vm1042, %v1145, %v1144
      %v1147 = vsel %vm1045, %v1017, %v1146
      %v1148 = vrot.slane %v1019, 7
      %v1149 = vsel %vm1048, %v1148, %v1147
      %1150 = vrot.lane.b32.xlu0 %v1149, 96
      %v1151 = vpop.permute.xlu0 %1150
      %v1153 = vrot.slane %v1005, 7
      %v1154 = vrot.slane %v1007, 6
      %v1155 = vsel %vm1030, %v1154, %v1153
      %v1156 = vrot.slane %v1009, 5
      %v1157 = vsel %vm1033, %v1156, %v1155
      %v1158 = vrot.slane %v1011, 4
      %v1159 = vsel %vm1036, %v1158, %v1157
      %v1160 = vrot.slane %v1013, 3
      %v1161 = vsel %vm1039, %v1160, %v1159
      %v1162 = vrot.slane %v1015, 2
      %v1163 = vsel %vm1042, %v1162, %v1161
      %v1164 = vrot.slane %v1017, 1
      %v1165 = vsel %vm1045, %v1164, %v1163
      %v1166 = vsel %vm1048, %v1019, %v1165
      %1167 = vrot.lane.b32.xlu0 %v1166, 112
      %v1168 = vpop.permute.xlu0 %1167
      %v1178 = vrot.slane %v1008, 7
      %v1179 = vsel %vm1030, %v1178, %v1006
      %v1180 = vrot.slane %v1010, 6
      %v1181 = vsel %vm1033, %v1180, %v1179
      %v1182 = vrot.slane %v1012, 5
      %v1183 = vsel %vm1036, %v1182, %v1181
      %v1184 = vrot.slane %v1014, 4
      %v1185 = vsel %vm1039, %v1184, %v1183
      %v1186 = vrot.slane %v1016, 3
      %v1187 = vsel %vm1042, %v1186, %v1185
      %v1188 = vrot.slane %v1018, 2
      %v1189 = vsel %vm1045, %v1188, %v1187
      %v1190 = vrot.slane %v1020, 1
      %v1191 = vsel %vm1048, %v1190, %v1189
      %v1193 = vrot.slane %v1006, 1
      %v1194 = vsel %vm1030, %v1008, %v1193
      %v1195 = vrot.slane %v1010, 7
      %v1196 = vsel %vm1033, %v1195, %v1194
      %v1197 = vrot.slane %v1012, 6
      %v1198 = vsel %vm1036, %v1197, %v1196
      %v1199 = vrot.slane %v1014, 5
      %v1200 = vsel %vm1039, %v1199, %v1198
      %v1201 = vrot.slane %v1016, 4
      %v1202 = vsel %vm1042, %v1201, %v1200
      %v1203 = vrot.slane %v1018, 3
      %v1204 = vsel %vm1045, %v1203, %v1202
      %v1205 = vrot.slane %v1020, 2
      %v1206 = vsel %vm1048, %v1205, %v1204
      %1207 = vrot.lane.b32.xlu0 %v1206, 16
      %v1208 = vpop.permute.xlu0 %1207
      %v1210 = vrot.slane %v1006, 2
      %v1211 = vrot.slane %v1008, 1
      %v1212 = vsel %vm1030, %v1211, %v1210
      %v1213 = vsel %vm1033, %v1010, %v1212
      %v1214 = vrot.slane %v1012, 7
      %v1215 = vsel %vm1036, %v1214, %v1213
      %v1216 = vrot.slane %v1014, 6
      %v1217 = vsel %vm1039, %v1216, %v1215
      %v1218 = vrot.slane %v1016, 5
      %v1219 = vsel %vm1042, %v1218, %v1217
      %v1220 = vrot.slane %v1018, 4
      %v1221 = vsel %vm1045, %v1220, %v1219
      %v1222 = vrot.slane %v1020, 3
      %v1223 = vsel %vm1048, %v1222, %v1221
      %1224 = vrot.lane.b32.xlu0 %v1223, 32
      %v1225 = vpop.permute.xlu0 %1224
      %v1227 = vrot.slane %v1006, 3
      %v1228 = vrot.slane %v1008, 2
      %v1229 = vsel %vm1030, %v1228, %v1227
      %v1230 = vrot.slane %v1010, 1
      %v1231 = vsel %vm1033, %v1230, %v1229
      %v1232 = vsel %vm1036, %v1012, %v1231
      %v1233 = vrot.slane %v1014, 7
      %v1234 = vsel %vm1039, %v1233, %v1232
      %v1235 = vrot.slane %v1016, 6
      %v1236 = vsel %vm1042, %v1235, %v1234
      %v1237 = vrot.slane %v1018, 5
      %v1238 = vsel %vm1045, %v1237, %v1236
      %v1239 = vrot.slane %v1020, 4
      %v1240 = vsel %vm1048, %v1239, %v1238
      %1241 = vrot.lane.b32.xlu0 %v1240, 48
      %v1242 = vpop.permute.xlu0 %1241
      %v1244 = vrot.slane %v1006, 4
      %v1245 = vrot.slane %v1008, 3
      %v1246 = vsel %vm1030, %v1245, %v1244
      %v1247 = vrot.slane %v1010, 2
      %v1248 = vsel %vm1033, %v1247, %v1246
      %v1249 = vrot.slane %v1012, 1
      %v1250 = vsel %vm1036, %v1249, %v1248
      %v1251 = vsel %vm1039, %v1014, %v1250
      %v1252 = vrot.slane %v1016, 7
      %v1253 = vsel %vm1042, %v1252, %v1251
      %v1254 = vrot.slane %v1018, 6
      %v1255 = vsel %vm1045, %v1254, %v1253
      %v1256 = vrot.slane %v1020, 5
      %v1257 = vsel %vm1048, %v1256, %v1255
      %1258 = vrot.lane.b32.xlu0 %v1257, 64
      %v1259 = vpop.permute.xlu0 %1258
      %v1261 = vrot.slane %v1006, 5
      %v1262 = vrot.slane %v1008, 4
      %v1263 = vsel %vm1030, %v1262, %v1261
      %v1264 = vrot.slane %v1010, 3
      %v1265 = vsel %vm1033, %v1264, %v1263
      %v1266 = vrot.slane %v1012, 2
      %v1267 = vsel %vm1036, %v1266, %v1265
      %v1268 = vrot.slane %v1014, 1
      %v1269 = vsel %vm1039, %v1268, %v1267
      %v1270 = vsel %vm1042, %v1016, %v1269
      %v1271 = vrot.slane %v1018, 7
      %v1272 = vsel %vm1045, %v1271, %v1270
      %v1273 = vrot.slane %v1020, 6
      %v1274 = vsel %vm1048, %v1273, %v1272
      %1275 = vrot.lane.b32.xlu0 %v1274, 80
      %v1276 = vpop.permute.xlu0 %1275
      %v1278 = vrot.slane %v1006, 6
      %v1279 = vrot.slane %v1008, 5
      %v1280 = vsel %vm1030, %v1279, %v1278
      %v1281 = vrot.slane %v1010, 4
      %v1282 = vsel %vm1033, %v1281, %v1280
      %v1283 = vrot.slane %v1012, 3
      %v1284 = vsel %vm1036, %v1283, %v1282
      %v1285 = vrot.slane %v1014, 2
      %v1286 = vsel %vm1039, %v1285, %v1284
      %v1287 = vrot.slane %v1016, 1
      %v1288 = vsel %vm1042, %v1287, %v1286
      %v1289 = vsel %vm1045, %v1018, %v1288
      %v1290 = vrot.slane %v1020, 7
      %v1291 = vsel %vm1048, %v1290, %v1289
      %1292 = vrot.lane.b32.xlu0 %v1291, 96
      %v1293 = vpop.permute.xlu0 %1292
      %v1295 = vrot.slane %v1006, 7
      %v1296 = vrot.slane %v1008, 6
      %v1297 = vsel %vm1030, %v1296, %v1295
      %v1298 = vrot.slane %v1010, 5
      %v1299 = vsel %vm1033, %v1298, %v1297
      %v1300 = vrot.slane %v1012, 4
      %v1301 = vsel %vm1036, %v1300, %v1299
      %v1302 = vrot.slane %v1014, 3
      %v1303 = vsel %vm1039, %v1302, %v1301
      %v1304 = vrot.slane %v1016, 2
      %v1305 = vsel %vm1042, %v1304, %v1303
      %v1306 = vrot.slane %v1018, 1
      %v1307 = vsel %vm1045, %v1306, %v1305
      %v1308 = vsel %vm1048, %v1020, %v1307
      %1309 = vrot.lane.b32.xlu0 %v1308, 112
      %v1310 = vpop.permute.xlu0 %1309
      %v1312 = vsel %vm759, %v1049, %v1066
      %v1313 = vsel %vm793, %v1312, %v1083
      %v1314 = vsel %vm827, %v1313, %v1100
      %v1315 = vsel %vm861, %v1314, %v1117
      %vm1316 = vcmask 654336
      %v1317 = vsel %vm1316, %v1315, %v1134
      %vm1318 = vcmask 785408
      %v1319 = vsel %vm1318, %v1317, %v1151
      %vm1320 = vcmask 916480
      %v1321 = vsel %vm1320, %v1319, %v1168
      %v1322 = vsel %vm759, %v1191, %v1208
      %v1323 = vsel %vm793, %v1322, %v1225
      %v1324 = vsel %vm827, %v1323, %v1242
      %v1325 = vsel %vm861, %v1324, %v1259
      %v1326 = vsel %vm1316, %v1325, %v1276
      %v1327 = vsel %vm1318, %v1326, %v1293
      %v1328 = vsel %vm1320, %v1327, %v1310
      %1329 = vst [vmem:[%s192] sm:$0xff] %v1321
      %1330 = vst [vmem:[%s192 + $0x8] sm:$0xff] %v1328
      %1331 = vrot.lane.b32.xlu0 %v1049, 112
      %v1332 = vpop.permute.xlu0 %1331
      %1335 = vrot.lane.b32.xlu0 %v1081, 16
      %v1336 = vpop.permute.xlu0 %1335
      %1338 = vrot.lane.b32.xlu0 %v1098, 32
      %v1339 = vpop.permute.xlu0 %1338
      %1341 = vrot.lane.b32.xlu0 %v1115, 48
      %v1342 = vpop.permute.xlu0 %1341
      %1344 = vrot.lane.b32.xlu0 %v1132, 64
      %v1345 = vpop.permute.xlu0 %1344
      %1347 = vrot.lane.b32.xlu0 %v1149, 80
      %v1348 = vpop.permute.xlu0 %1347
      %1350 = vrot.lane.b32.xlu0 %v1166, 96
      %v1351 = vpop.permute.xlu0 %1350
      %1353 = vrot.lane.b32.xlu0 %v1191, 112
      %v1354 = vpop.permute.xlu0 %1353
      %1357 = vrot.lane.b32.xlu0 %v1223, 16
      %v1358 = vpop.permute.xlu0 %1357
      %1360 = vrot.lane.b32.xlu0 %v1240, 32
      %v1361 = vpop.permute.xlu0 %1360
      %1363 = vrot.lane.b32.xlu0 %v1257, 48
      %v1364 = vpop.permute.xlu0 %1363
      %1366 = vrot.lane.b32.xlu0 %v1274, 64
      %v1367 = vpop.permute.xlu0 %1366
      %1369 = vrot.lane.b32.xlu0 %v1291, 80
      %v1370 = vpop.permute.xlu0 %1369
      %1372 = vrot.lane.b32.xlu0 %v1308, 96
      %v1373 = vpop.permute.xlu0 %1372
      %v1375 = vsel %vm759, %v1332, %v1064
      %v1376 = vsel %vm793, %v1375, %v1336
      %v1377 = vsel %vm827, %v1376, %v1339
      %v1378 = vsel %vm861, %v1377, %v1342
      %v1379 = vsel %vm1316, %v1378, %v1345
      %v1380 = vsel %vm1318, %v1379, %v1348
      %v1381 = vsel %vm1320, %v1380, %v1351
      %v1382 = vsel %vm759, %v1354, %v1206
      %v1383 = vsel %vm793, %v1382, %v1358
      %v1384 = vsel %vm827, %v1383, %v1361
      %v1385 = vsel %vm861, %v1384, %v1364
      %v1386 = vsel %vm1316, %v1385, %v1367
      %v1387 = vsel %vm1318, %v1386, %v1370
      %v1388 = vsel %vm1320, %v1387, %v1373
      %1389 = vst [vmem:[%s192 + $0x10] sm:$0xff] %v1381
      %1390 = vst [vmem:[%s192 + $0x18] sm:$0xff] %v1388
      %p1391 = scmp.lt.s32.totalorder %s18, 1
      %s1392 = scalar_select %p1391, %s18, 1
      %p1393 = scmp.lt.s32.totalorder %s19, 1
      %s1394 = scalar_select %p1393, %s19, 1
      %s1395 = smul.addr %s1394, 4
      %s1396 = smul.addr %s1392, 8
      %s1397 = sadd.s32 %s1395, %s1396
      %s1398 = smul.addr %s1397, 8
      %s1399 = scalar_lea.vmem %s3, %s1398
      // Predicated region
      $region33: #{skip_upconv_nhwc.1} parent=31 // pred_check
        %p1400 = pneg %p114
      $region34: #{skip_upconv_nhwc.1} parent=31 // pred_check_branch
        %1402 = sbr.rel (%p1400) target = $region36
      $region35: #{skip_upconv_nhwc.1} parent=31 // pred_region
        _
      $region36: #{skip_upconv_nhwc.1} parent=31 // pred_fallthru
        _
    $region32: #{skip_upconv_nhwc.1} parent=5 // pred_fallthru
      _
    %p1403 = scmp.le.s32.totalorder 2, %s9
    // Predicated region
    $region37: #{skip_upconv_nhwc.1} parent=5 // pred_check
      %p1404 = pneg %p1403
    $region38: #{skip_upconv_nhwc.1} parent=5 // pred_check_branch
      %1406 = sbr.rel (%p1404) target = $region40
    $region39: #{skip_upconv_nhwc.1} parent=5 // pred_region
      %s1407 = ssub.s32 %s9, 2
      // Predicated region
      $region41: #{skip_upconv_nhwc.1} parent=39 // pred_check
        %p1408 = pneg %p120
      $region42: #{skip_upconv_nhwc.1} parent=39 // pred_check_branch
        %1410 = sbr.rel (%p1408) target = $region44
      $region43: #{skip_upconv_nhwc.1} parent=39 // pred_region
        %p1411 = scmp.lt.s32.totalorder %s20, 1
        %s1412 = scalar_select %p1411, %s20, 1
        %p1413 = scmp.lt.s32.totalorder %s21, 1
        %s1414 = scalar_select %p1413, %s21, 1
        %s1415 = smul.addr %s1414, 4
        %s1416 = smul.addr %s1412, 8
        %s1417 = sadd.s32 %s1415, %s1416
        %s1418 = smul.addr %s1417, 8
        %s1419 = scalar_lea.vmem %s3, %s1418
      $region44: #{skip_upconv_nhwc.1} parent=39 // pred_fallthru
        _
    $region40: #{skip_upconv_nhwc.1} parent=5 // pred_fallthru
      _
  $region6: #{skip_upconv_nhwc.1} parent=0 // loop_footer
    %s13 = sadd.s32 1, %s9
  $region7: #{skip_upconv_nhwc.1} parent=0 // loop_footer_branch
    %8 = sbr.rel target = $region3
  $region8: #{skip_upconv_nhwc.1} parent=0 // loop_exit
    _

</llo_original>
